<compile_context>
chip_gen: v7x
topology: tpu7x:2x2x1
jax: 0.10.0
libtpu: 0.0.40
codegen_flags: <defaults>
</compile_context>

<pallas_src>
import functools

import jax
import jax.numpy as jnp
from jax.experimental import pallas as pl
from jax.experimental.pallas import tpu as pltpu

EPS = 0.05
N_SINKHORN_ITERS = 3


# ---------------------------------------------------------------------------
# In-kernel helpers (pure jnp, traced into the Pallas body)
# ---------------------------------------------------------------------------
def _l2_normalize(x):
    # x * rsqrt(sum(x^2)): EUP rsqrt instead of sqrt + divide on the VALU.
    ssq = jnp.sum(x * x, axis=-1, keepdims=True)
    return x * jax.lax.rsqrt(ssq + 1e-24)


def _softmax(x):
    m = jnp.max(x, axis=-1, keepdims=True)
    e = jnp.exp(x - m)
    return e * pl.reciprocal(jnp.sum(e, axis=-1, keepdims=True), approx=True)


def _log_softmax(x):
    # Fused log-softmax: no exp->divide->log round trip, no log(0) = -inf.
    s = x - jnp.max(x, axis=-1, keepdims=True)
    return s - jnp.log(jnp.sum(jnp.exp(s), axis=-1, keepdims=True))


def _sinkhorn_batched(scores, eps, niters):
    # scores: (2, N, K) -- both views in one pass.  The torch sinkhorn works
    # on the transposed matrix; done here transpose-free: per-prototype sums
    # are over axis 1 (samples), per-sample sums over axis 2 (lanes).
    _, n, k = scores.shape
    m = jnp.exp(scores * (1.0 / eps))
    # NOTE: torch's global `Q /= Q.sum()` is dropped: the row/col
    # normalizations below are scale invariant and exp(|scores|/eps) <= e^20
    # cannot overflow f32, so it only cost a full-matrix reduction.
    r = 1.0 / k
    c = 1.0 / n
    for _ in range(niters):
        u = jnp.sum(m, axis=1, keepdims=True)        # (2, 1, K) per-prototype
        m = m * (r / u)                              # exact divide: tiny vector
        rs = jnp.sum(m, axis=2, keepdims=True)       # (2, N, 1) per-sample
        m = m * (c / rs)
    rs = jnp.sum(m, axis=2, keepdims=True)           # rows already ~c; exact
    return m * (1.0 / rs)


# ---------------------------------------------------------------------------
# Pallas kernel
# ---------------------------------------------------------------------------
def _swav_kernel(x1_ref, x2_ref, wb_ref, bb_ref, q_ref, queue_hbm, ptr_ref,
                 loss_ref, newq_hbm,
                 qbuf, z1buf, sem,
                 *, batch, eps, niters):
    # Read the queue pointer ONCE, before any DMA wait and before the write
    # DMA is built (DMA waits break SMEM sst->sld forwarding).
    ptr = pl.multiple_of(ptr_ref[0], batch)

    # Start pulling the feature queue HBM -> VMEM; overlaps the backbone matmul.
    rd = pltpu.make_async_copy(queue_hbm, qbuf, sem.at[0])
    rd.start()

    # --- backbone: fused (2B, F) @ (F, D) bf16 matmul, f32 accumulation ------
    x12 = jnp.concatenate([x1_ref[...], x2_ref[...]],
                          axis=0).astype(jnp.bfloat16)               # (2B, F)
    wb = wb_ref[...].astype(jnp.bfloat16)                            # (F, D)
    z12 = jnp.dot(x12, wb, preferred_element_type=jnp.float32) + bb_ref[...]

    # Stage the new queue rows (unnormalized z1, as in torch) for writeback.
    z1buf[...] = z12[:batch]

    z12_n = _l2_normalize(z12)                                       # (2B, D)
    q_n = _l2_normalize(q_ref[...])                                  # (K, D)

    # The loss must use the OLD queue and the output aliases the input queue
    # buffer, so the read must complete before the in-place write starts.
    # The read was issued at kernel entry, so this wait is cheap; the write
    # is then hidden behind the prototype matmuls, sinkhorn and cross-entropy.
    rd.wait()
    wr = pltpu.make_async_copy(z1buf, newq_hbm.at[pl.ds(ptr, batch), :],
                               sem.at[1])
    wr.start()

    queue_n = _l2_normalize(qbuf[...])                               # (S, D)

    # --- prototype scores: queue @ Q^T computed once, shared by both views ---
    p12 = jax.lax.dot_general(z12_n, q_n, (((1,), (1,)), ((), ())),
                              preferred_element_type=jnp.float32)    # (2B, K)
    qscores = jax.lax.dot_general(queue_n, q_n, (((1,), (1,)), ((), ())),
                                  preferred_element_type=jnp.float32)  # (S, K)

    k = q_ref.shape[0]
    s = qbuf.shape[0]
    p3 = p12.reshape(2, batch, k)                                    # (2, B, K)
    # Build (2, B+S, K) scores with tile-aligned 2D concat + leading reshape.
    scores = jnp.concatenate(
        [p12[:batch], qscores, p12[batch:], qscores],
        axis=0).reshape(2, batch + s, k)

    # --- codes (one batched sinkhorn for both views) + cross-entropy ---------
    codes = _softmax(_sinkhorn_batched(scores, eps, niters)[:, :batch, :])
    logp = _log_softmax(p3)                                          # (2, B, K)
    ce = -(codes[1] * logp[0] + codes[0] * logp[1])                  # (B, K)
    loss_ref[...] = jnp.sum(jnp.sum(ce, axis=1, keepdims=True),
                            axis=0, keepdims=True) * (1.0 / batch)   # (1, 1)

    # Queue writeback completes last; its HBM latency was hidden by the above.
    wr.wait()


# ---------------------------------------------------------------------------
# Wrapper
# ---------------------------------------------------------------------------
def swav_forward(x1, x2, wb, bb, q_proto, queue, ptr,
                 *, eps=EPS, niters=N_SINKHORN_ITERS):
    b = x1.shape[0]
    s, d = queue.shape
    # torch's `feature_queue[ptr:ptr+B] = z` never wraps; require batch | S so
    # ptr stays batch-aligned and the write DMA stays in bounds.
    assert s % b == 0, "n_stored_features must be a multiple of the batch size"

    # Row-major NCHW flatten == torch .reshape(B,-1); metadata-only, no HBM op.
    x1f = x1.reshape(b, -1)
    x2f = x2.reshape(b, -1)

    kernel = functools.partial(_swav_kernel, batch=b, eps=eps, niters=niters)
    vmem = pl.BlockSpec(memory_space=pltpu.MemorySpace.VMEM)
    smem = pl.BlockSpec(memory_space=pltpu.MemorySpace.SMEM)
    anyspace = pl.BlockSpec(memory_space=pl.ANY)

    loss, new_queue = pl.pallas_call(
        kernel,
        out_shape=(
            jax.ShapeDtypeStruct((1, 1), jnp.float32),   # loss
            jax.ShapeDtypeStruct((s, d), jnp.float32),   # feature queue (in place)
        ),
        in_specs=[vmem, vmem, vmem, vmem, vmem, anyspace, smem],
        out_specs=(vmem, anyspace),
        scratch_shapes=[
            pltpu.VMEM((s, d), jnp.float32),    # staged old queue (read)
            pltpu.VMEM((b, d), jnp.float32),    # staged new rows (write)
            pltpu.SemaphoreType.DMA((2,)),
        ],
        input_output_aliases={5: 1},            # queue input -> queue output
    )(x1f, x2f, wb, bb.reshape(1, -1), q_proto, queue, ptr)

    new_ptr = (ptr + b) % s                     # pure scalar math, wrapper-side
    return loss[0, 0], new_queue, new_ptr


# ---------------------------------------------------------------------------
# Pure-JAX reference (mirrors the torch code literally; same bf16 backbone
# matmul as the kernel so the comparison is apples-to-apples)
# ---------------------------------------------------------------------------
def _ref_forward(x1, x2, wb, bb, q_proto, queue, ptr,
                 eps=EPS, niters=N_SINKHORN_ITERS):
    b = x1.shape[0]
    s = queue.shape[0]
    x1f = x1.reshape(b, -1).astype(jnp.bfloat16)
    x2f = x2.reshape(b, -1).astype(jnp.bfloat16)
    wbh = wb.astype(jnp.bfloat16)
    z1 = jnp.dot(x1f, wbh, preferred_element_type=jnp.float32) + bb
    z2 = jnp.dot(x2f, wbh, preferred_element_type=jnp.float32) + bb

    def normalize(x):
        return x / jnp.maximum(
            jnp.linalg.norm(x, axis=-1, keepdims=True), 1e-12)

    def sinkhorn(scores):
        Q = jnp.exp(scores / eps).T
        Q = Q / jnp.sum(Q)
        K, B = Q.shape
        r = jnp.ones(K) / K
        c = jnp.ones(B) / B
        for _ in range(niters):
            u = jnp.sum(Q, axis=1)
            Q = Q * (r / u)[:, None]
            Q = Q * (c / jnp.sum(Q, axis=0))[None, :]
        return (Q / jnp.sum(Q, axis=0, keepdims=True)).T

    def p_and_c(z):
        z_n = normalize(z)
        q_n = normalize(q_proto)
        P = z_n @ q_n.T
        Z_n = normalize(queue)
        P_ref = jnp.concatenate([P, Z_n @ q_n.T], axis=0)
        C = sinkhorn(P_ref)[:b]
        C = jax.nn.softmax(C, axis=-1)
        return P, C

    def loss_fn(p, c):
        p = jax.nn.softmax(p, axis=-1)
        return jnp.mean(-jnp.sum(c * jnp.log(p), axis=-1))

    P1, C1 = p_and_c(z1)
    P2, C2 = p_and_c(z2)
    loss = loss_fn(P1, C2) + loss_fn(P2, C1)
    new_queue = jax.lax.dynamic_update_slice(queue, z1, (ptr[0], 0))
    new_ptr = (ptr + b) % s
    return loss, new_queue, new_ptr


if __name__ == "__main__":
    # Small but lane/sublane-dense shapes: D = K = S = 128 (full 128-lane
    # vregs / MXU columns), batch = 8 (one f32 sublane tile), F = C*H*W = 1024.
    B, C, H, W = 8, 4, 16, 16
    FEATURES_DIM = 128
    N_PROTOTYPES = 128
    N_STORED_FEATURES = 128

    key = jax.random.PRNGKey(0)
    k1, k2, k3, k4, k5, k6 = jax.random.split(key, 6)

    X1 = jax.random.normal(k1, (B, C, H, W), jnp.float32)
    X2 = jax.random.normal(k2, (B, C, H, W), jnp.float32)
    W_backbone = jax.random.normal(k3, (C * H * W, FEATURES_DIM),
                                   jnp.float32) * 0.02
    b_backbone = jax.random.normal(k4, (FEATURES_DIM,), jnp.float32) * 0.01
    Q_proto = jax.random.normal(k5, (N_PROTOTYPES, FEATURES_DIM), jnp.float32)
    feature_queue = jax.random.normal(
        k6, (N_STORED_FEATURES, FEATURES_DIM), jnp.float32)
    queue_ptr = jnp.array([24], jnp.int32)        # batch-aligned, nonzero

    # Reference first (torch-literal), then the Pallas kernel.
    loss_r, new_queue_r, new_ptr_r = _ref_forward(
        X1, X2, W_backbone, b_backbone, Q_proto, feature_queue, queue_ptr)
    jax.block_until_ready((loss_r, new_queue_r, new_ptr_r))

    loss, new_queue, new_ptr = swav_forward(
        X1, X2, W_backbone, b_backbone, Q_proto, feature_queue, queue_ptr)
    jax.block_until_ready((loss, new_queue, new_ptr))

    # Numerical checks (approx reciprocal only in the codes softmax; sinkhorn
    # normalizers are exact, queue rows are exact backbone outputs).
    assert jnp.allclose(loss, loss_r, rtol=1e-2, atol=1e-3), (loss, loss_r)
    assert jnp.allclose(new_queue, new_queue_r, rtol=1e-3, atol=1e-3)
    assert int(new_ptr[0]) == int(new_ptr_r[0])

    print("KERNEL_OK")
</pallas_src>

<mosaic_0001>
module attributes {stable_mosaic.version = 11 : i64} {
  func.func @_swav_kernel(%arg0: memref<8x1024xf32, #tpu.memory_space<vmem>>, %arg1: memref<8x1024xf32, #tpu.memory_space<vmem>>, %arg2: memref<1024x128xf32, #tpu.memory_space<vmem>>, %arg3: memref<1x128xf32, #tpu.memory_space<vmem>>, %arg4: memref<128x128xf32, #tpu.memory_space<vmem>>, %arg5: memref<128x128xf32, #tpu.memory_space<any>>, %arg6: memref<1xi32, #tpu.memory_space<smem>>, %arg7: memref<1x1xf32, #tpu.memory_space<vmem>>, %arg8: memref<128x128xf32, #tpu.memory_space<any>>, %arg9: memref<128x128xf32, #tpu.memory_space<vmem>>, %arg10: memref<8x128xf32, #tpu.memory_space<vmem>>, %arg11: memref<2x!tpu.dma_semaphore, #tpu.memory_space<semaphore_mem>>) attributes {dimension_semantics = [], scalar_prefetch = 0 : i64, scratch_operands = 3 : i64, tpu.core_type = #tpu.core_type<tc>} {
    %c0 = arith.constant 0 : index
    %0 = memref.load %arg6[%c0] : memref<1xi32, #tpu.memory_space<smem>>
    %1 = tpu.assume_multiple %0, 8 : i32
    %c0_i32 = arith.constant 0 : i32
    %2 = tpu.memref_slice %arg11[%c0_i32] : memref<2x!tpu.dma_semaphore, #tpu.memory_space<semaphore_mem>> -> memref<1x!tpu.dma_semaphore, #tpu.memory_space<semaphore_mem>>
    %3 = tpu.memref_squeeze %2 : memref<1x!tpu.dma_semaphore, #tpu.memory_space<semaphore_mem>> -> memref<!tpu.dma_semaphore, #tpu.memory_space<semaphore_mem>>
    tpu.enqueue_dma source(%arg5 : memref<128x128xf32, #tpu.memory_space<any>>) target(%arg9 : memref<128x128xf32, #tpu.memory_space<vmem>>) target_semaphore(%3 : memref<!tpu.dma_semaphore, #tpu.memory_space<semaphore_mem>>)
    %c0_0 = arith.constant 0 : index
    %c0_1 = arith.constant 0 : index
    %4 = vector.load %arg0[%c0_0, %c0_1] : memref<8x1024xf32, #tpu.memory_space<vmem>>, vector<8x1024xf32>
    %c0_2 = arith.constant 0 : index
    %c0_3 = arith.constant 0 : index
    %5 = vector.load %arg1[%c0_2, %c0_3] : memref<8x1024xf32, #tpu.memory_space<vmem>>, vector<8x1024xf32>
    %6 = tpu.concatenate %4, %5 in 0 : vector<8x1024xf32>, vector<8x1024xf32> -> vector<16x1024xf32>
    %7 = arith.truncf %6 : vector<16x1024xf32> to vector<16x1024xbf16>
    %c0_4 = arith.constant 0 : index
    %c0_5 = arith.constant 0 : index
    %8 = vector.load %arg2[%c0_4, %c0_5] : memref<1024x128xf32, #tpu.memory_space<vmem>>, vector<1024x128xf32>
    %9 = arith.truncf %8 : vector<1024x128xf32> to vector<1024x128xbf16>
    %cst = arith.constant dense<0.000000e+00> : vector<16x128xf32>
    %10 = tpu.matmul %7, %9, %cst {dimension_numbers = #tpu.dot_dimension_numbers<[1], [0], [0], [1], [0, 0, 1, 1], [], []>} : vector<16x1024xbf16>, vector<1024x128xbf16>, vector<16x128xf32> -> vector<16x128xf32>
    %c0_6 = arith.constant 0 : index
    %c0_7 = arith.constant 0 : index
    %11 = vector.load %arg3[%c0_6, %c0_7] : memref<1x128xf32, #tpu.memory_space<vmem>>, vector<1x128xf32>
    %12 = vector.broadcast %11 : vector<1x128xf32> to vector<16x128xf32>
    %13 = arith.addf %10, %12 : vector<16x128xf32>
    %14 = vector.extract_strided_slice %13 {offsets = [0, 0], sizes = [8, 128], strides = [1, 1]} : vector<16x128xf32> to vector<8x128xf32>
    %c0_8 = arith.constant 0 : index
    %c0_9 = arith.constant 0 : index
    %15 = vector.load %arg10[%c0_8, %c0_9] : memref<8x128xf32, #tpu.memory_space<vmem>>, vector<8x128xf32>
    tpu.vector_store %arg10[%c0_8, %c0_9], %14 {strides = array<i32>} : memref<8x128xf32, #tpu.memory_space<vmem>>, vector<8x128xf32>,
    %16 = arith.mulf %13, %13 : vector<16x128xf32>
    %cst_10 = arith.constant dense<0.000000e+00> : vector<16xf32>
    %17 = vector.multi_reduction <add>, %16, %cst_10 [1] : vector<16x128xf32> to vector<16xf32>
    %18 = vector.shape_cast %17 : vector<16xf32> to vector<16x1xf32>
    %cst_11 = arith.constant 1.000000e-24 : f32
    %19 = vector.broadcast %cst_11 : f32 to vector<16x1xf32>
    %20 = arith.addf %18, %19 : vector<16x1xf32>
    %21 = math.rsqrt %20 : vector<16x1xf32>
    %22 = vector.broadcast %21 : vector<16x1xf32> to vector<16x128xf32>
    %23 = arith.mulf %13, %22 : vector<16x128xf32>
    %c0_12 = arith.constant 0 : index
    %c0_13 = arith.constant 0 : index
    %24 = vector.load %arg4[%c0_12, %c0_13] : memref<128x128xf32, #tpu.memory_space<vmem>>, vector<128x128xf32>
    %25 = arith.mulf %24, %24 : vector<128x128xf32>
    %cst_14 = arith.constant dense<0.000000e+00> : vector<128xf32>
    %26 = vector.multi_reduction <add>, %25, %cst_14 [1] : vector<128x128xf32> to vector<128xf32>
    %27 = vector.shape_cast %26 : vector<128xf32> to vector<128x1xf32>
    %cst_15 = arith.constant 1.000000e-24 : f32
    %28 = vector.broadcast %cst_15 : f32 to vector<128x1xf32>
    %29 = arith.addf %27, %28 : vector<128x1xf32>
    %30 = math.rsqrt %29 : vector<128x1xf32>
    %31 = vector.broadcast %30 : vector<128x1xf32> to vector<128x128xf32>
    %32 = arith.mulf %24, %31 : vector<128x128xf32>
    %c0_i32_16 = arith.constant 0 : i32
    %33 = tpu.memref_slice %arg11[%c0_i32_16] : memref<2x!tpu.dma_semaphore, #tpu.memory_space<semaphore_mem>> -> memref<1x!tpu.dma_semaphore, #tpu.memory_space<semaphore_mem>>
    %34 = tpu.memref_squeeze %33 : memref<1x!tpu.dma_semaphore, #tpu.memory_space<semaphore_mem>> -> memref<!tpu.dma_semaphore, #tpu.memory_space<semaphore_mem>>
    tpu.wait_dma2 semaphore(%34 : memref<!tpu.dma_semaphore, #tpu.memory_space<semaphore_mem>>) src(%arg5 : memref<128x128xf32, #tpu.memory_space<any>>) dst(%arg9 : memref<128x128xf32, #tpu.memory_space<vmem>>)
    %c1_i32 = arith.constant 1 : i32
    %c0_i32_17 = arith.constant 0 : i32
    %35 = tpu.memref_slice %arg8[%1, %c0_i32_17] : memref<128x128xf32, #tpu.memory_space<any>> -> memref<8x128xf32, #tpu.memory_space<any>>
    %36 = tpu.memref_slice %arg11[%c1_i32] : memref<2x!tpu.dma_semaphore, #tpu.memory_space<semaphore_mem>> -> memref<1x!tpu.dma_semaphore, #tpu.memory_space<semaphore_mem>>
    %37 = tpu.memref_squeeze %36 : memref<1x!tpu.dma_semaphore, #tpu.memory_space<semaphore_mem>> -> memref<!tpu.dma_semaphore, #tpu.memory_space<semaphore_mem>>
    tpu.enqueue_dma source(%arg10 : memref<8x128xf32, #tpu.memory_space<vmem>>) target(%35 : memref<8x128xf32, #tpu.memory_space<any>>) target_semaphore(%37 : memref<!tpu.dma_semaphore, #tpu.memory_space<semaphore_mem>>)
    %c0_18 = arith.constant 0 : index
    %c0_19 = arith.constant 0 : index
    %38 = vector.load %arg9[%c0_18, %c0_19] : memref<128x128xf32, #tpu.memory_space<vmem>>, vector<128x128xf32>
    %39 = arith.mulf %38, %38 : vector<128x128xf32>
    %cst_20 = arith.constant dense<0.000000e+00> : vector<128xf32>
    %40 = vector.multi_reduction <add>, %39, %cst_20 [1] : vector<128x128xf32> to vector<128xf32>
    %41 = vector.shape_cast %40 : vector<128xf32> to vector<128x1xf32>
    %cst_21 = arith.constant 1.000000e-24 : f32
    %42 = vector.broadcast %cst_21 : f32 to vector<128x1xf32>
    %43 = arith.addf %41, %42 : vector<128x1xf32>
    %44 = math.rsqrt %43 : vector<128x1xf32>
    %45 = vector.broadcast %44 : vector<128x1xf32> to vector<128x128xf32>
    %46 = arith.mulf %38, %45 : vector<128x128xf32>
    %cst_22 = arith.constant dense<0.000000e+00> : vector<16x128xf32>
    %47 = tpu.matmul %23, %32, %cst_22 {dimension_numbers = #tpu.dot_dimension_numbers<[1], [1], [0], [0], [0, 0, 1, 0], [], []>} : vector<16x128xf32>, vector<128x128xf32>, vector<16x128xf32> -> vector<16x128xf32>
    %cst_23 = arith.constant dense<0.000000e+00> : vector<128x128xf32>
    %48 = tpu.matmul %46, %32, %cst_23 {dimension_numbers = #tpu.dot_dimension_numbers<[1], [1], [0], [0], [0, 0, 1, 0], [], []>} : vector<128x128xf32>, vector<128x128xf32>, vector<128x128xf32> -> vector<128x128xf32>
    %49 = vector.shape_cast %47 : vector<16x128xf32> to vector<2x8x128xf32>
    %50 = vector.extract_strided_slice %47 {offsets = [0, 0], sizes = [8, 128], strides = [1, 1]} : vector<16x128xf32> to vector<8x128xf32>
    %51 = vector.extract_strided_slice %47 {offsets = [8, 0], sizes = [8, 128], strides = [1, 1]} : vector<16x128xf32> to vector<8x128xf32>
    %52 = tpu.concatenate %50, %48, %51, %48 in 0 : vector<8x128xf32>, vector<128x128xf32>, vector<8x128xf32>, vector<128x128xf32> -> vector<272x128xf32>
    %53 = vector.shape_cast %52 : vector<272x128xf32> to vector<2x136x128xf32>
    %cst_24 = arith.constant 2.000000e+01 : f32
    %54 = vector.broadcast %cst_24 : f32 to vector<2x136x128xf32>
    %55 = arith.mulf %53, %54 : vector<2x136x128xf32>
    %56 = math.exp %55 : vector<2x136x128xf32>
    %cst_25 = arith.constant dense<0.000000e+00> : vector<2x128xf32>
    %57 = vector.multi_reduction <add>, %56, %cst_25 [1] : vector<2x136x128xf32> to vector<2x128xf32>
    %58 = vector.shape_cast %57 : vector<2x128xf32> to vector<2x1x128xf32>
    %cst_26 = arith.constant 7.812500e-03 : f32
    %59 = vector.broadcast %cst_26 : f32 to vector<2x1x128xf32>
    %60 = arith.divf %59, %58 : vector<2x1x128xf32>
    %61 = vector.broadcast %60 : vector<2x1x128xf32> to vector<2x136x128xf32>
    %62 = arith.mulf %56, %61 : vector<2x136x128xf32>
    %cst_27 = arith.constant dense<0.000000e+00> : vector<2x136xf32>
    %63 = vector.multi_reduction <add>, %62, %cst_27 [2] : vector<2x136x128xf32> to vector<2x136xf32>
    %64 = vector.shape_cast %63 : vector<2x136xf32> to vector<2x136x1xf32>
    %cst_28 = arith.constant 0.0073529412 : f32
    %65 = vector.broadcast %cst_28 : f32 to vector<2x136x1xf32>
    %66 = arith.divf %65, %64 : vector<2x136x1xf32>
    %67 = vector.broadcast %66 : vector<2x136x1xf32> to vector<2x136x128xf32>
    %68 = arith.mulf %62, %67 : vector<2x136x128xf32>
    %cst_29 = arith.constant dense<0.000000e+00> : vector<2x128xf32>
    %69 = vector.multi_reduction <add>, %68, %cst_29 [1] : vector<2x136x128xf32> to vector<2x128xf32>
    %70 = vector.shape_cast %69 : vector<2x128xf32> to vector<2x1x128xf32>
    %cst_30 = arith.constant 7.812500e-03 : f32
    %71 = vector.broadcast %cst_30 : f32 to vector<2x1x128xf32>
    %72 = arith.divf %71, %70 : vector<2x1x128xf32>
    %73 = vector.broadcast %72 : vector<2x1x128xf32> to vector<2x136x128xf32>
    %74 = arith.mulf %68, %73 : vector<2x136x128xf32>
    %cst_31 = arith.constant dense<0.000000e+00> : vector<2x136xf32>
    %75 = vector.multi_reduction <add>, %74, %cst_31 [2] : vector<2x136x128xf32> to vector<2x136xf32>
    %76 = vector.shape_cast %75 : vector<2x136xf32> to vector<2x136x1xf32>
    %cst_32 = arith.constant 0.0073529412 : f32
    %77 = vector.broadcast %cst_32 : f32 to vector<2x136x1xf32>
    %78 = arith.divf %77, %76 : vector<2x136x1xf32>
    %79 = vector.broadcast %78 : vector<2x136x1xf32> to vector<2x136x128xf32>
    %80 = arith.mulf %74, %79 : vector<2x136x128xf32>
    %cst_33 = arith.constant dense<0.000000e+00> : vector<2x128xf32>
    %81 = vector.multi_reduction <add>, %80, %cst_33 [1] : vector<2x136x128xf32> to vector<2x128xf32>
    %82 = vector.shape_cast %81 : vector<2x128xf32> to vector<2x1x128xf32>
    %cst_34 = arith.constant 7.812500e-03 : f32
    %83 = vector.broadcast %cst_34 : f32 to vector<2x1x128xf32>
    %84 = arith.divf %83, %82 : vector<2x1x128xf32>
    %85 = vector.broadcast %84 : vector<2x1x128xf32> to vector<2x136x128xf32>
    %86 = arith.mulf %80, %85 : vector<2x136x128xf32>
    %cst_35 = arith.constant dense<0.000000e+00> : vector<2x136xf32>
    %87 = vector.multi_reduction <add>, %86, %cst_35 [2] : vector<2x136x128xf32> to vector<2x136xf32>
    %88 = vector.shape_cast %87 : vector<2x136xf32> to vector<2x136x1xf32>
    %cst_36 = arith.constant 0.0073529412 : f32
    %89 = vector.broadcast %cst_36 : f32 to vector<2x136x1xf32>
    %90 = arith.divf %89, %88 : vector<2x136x1xf32>
    %91 = vector.broadcast %90 : vector<2x136x1xf32> to vector<2x136x128xf32>
    %92 = arith.mulf %86, %91 : vector<2x136x128xf32>
    %cst_37 = arith.constant dense<0.000000e+00> : vector<2x136xf32>
    %93 = vector.multi_reduction <add>, %92, %cst_37 [2] : vector<2x136x128xf32> to vector<2x136xf32>
    %94 = vector.shape_cast %93 : vector<2x136xf32> to vector<2x136x1xf32>
    %cst_38 = arith.constant 1.000000e+00 : f32
    %95 = vector.broadcast %cst_38 : f32 to vector<2x136x1xf32>
    %96 = arith.divf %95, %94 : vector<2x136x1xf32>
    %97 = vector.broadcast %96 : vector<2x136x1xf32> to vector<2x136x128xf32>
    %98 = arith.mulf %92, %97 : vector<2x136x128xf32>
    %99 = vector.extract_strided_slice %98 {offsets = [0, 0, 0], sizes = [2, 8, 128], strides = [1, 1, 1]} : vector<2x136x128xf32> to vector<2x8x128xf32>
    %cst_39 = arith.constant dense<0xFF800000> : vector<2x8xf32>
    %100 = vector.multi_reduction <maximumf>, %99, %cst_39 [2] : vector<2x8x128xf32> to vector<2x8xf32>
    %101 = vector.shape_cast %100 : vector<2x8xf32> to vector<2x8x1xf32>
    %102 = vector.broadcast %101 : vector<2x8x1xf32> to vector<2x8x128xf32>
    %103 = arith.subf %99, %102 : vector<2x8x128xf32>
    %104 = math.exp %103 : vector<2x8x128xf32>
    %cst_40 = arith.constant dense<0.000000e+00> : vector<2x8xf32>
    %105 = vector.multi_reduction <add>, %104, %cst_40 [2] : vector<2x8x128xf32> to vector<2x8xf32>
    %106 = vector.shape_cast %105 : vector<2x8xf32> to vector<2x8x1xf32>
    %107 = tpu.reciprocal %106 {approx = true} : vector<2x8x1xf32> -> vector<2x8x1xf32>
    %108 = vector.broadcast %107 : vector<2x8x1xf32> to vector<2x8x128xf32>
    %109 = arith.mulf %104, %108 : vector<2x8x128xf32>
    %cst_41 = arith.constant dense<0xFF800000> : vector<2x8xf32>
    %110 = vector.multi_reduction <maximumf>, %49, %cst_41 [2] : vector<2x8x128xf32> to vector<2x8xf32>
    %111 = vector.shape_cast %110 : vector<2x8xf32> to vector<2x8x1xf32>
    %112 = vector.broadcast %111 : vector<2x8x1xf32> to vector<2x8x128xf32>
    %113 = arith.subf %49, %112 : vector<2x8x128xf32>
    %114 = math.exp %113 : vector<2x8x128xf32>
    %cst_42 = arith.constant dense<0.000000e+00> : vector<2x8xf32>
    %115 = vector.multi_reduction <add>, %114, %cst_42 [2] : vector<2x8x128xf32> to vector<2x8xf32>
    %116 = vector.shape_cast %115 : vector<2x8xf32> to vector<2x8x1xf32>
    %117 = math.log %116 : vector<2x8x1xf32>
    %118 = vector.broadcast %117 : vector<2x8x1xf32> to vector<2x8x128xf32>
    %119 = arith.subf %113, %118 : vector<2x8x128xf32>
    %120 = vector.extract_strided_slice %109 {offsets = [1, 0, 0], sizes = [1, 8, 128], strides = [1, 1, 1]} : vector<2x8x128xf32> to vector<1x8x128xf32>
    %121 = vector.shape_cast %120 : vector<1x8x128xf32> to vector<8x128xf32>
    %122 = vector.extract_strided_slice %119 {offsets = [0, 0, 0], sizes = [1, 8, 128], strides = [1, 1, 1]} : vector<2x8x128xf32> to vector<1x8x128xf32>
    %123 = vector.shape_cast %122 : vector<1x8x128xf32> to vector<8x128xf32>
    %124 = arith.mulf %121, %123 : vector<8x128xf32>
    %125 = vector.extract_strided_slice %109 {offsets = [0, 0, 0], sizes = [1, 8, 128], strides = [1, 1, 1]} : vector<2x8x128xf32> to vector<1x8x128xf32>
    %126 = vector.shape_cast %125 : vector<1x8x128xf32> to vector<8x128xf32>
    %127 = vector.extract_strided_slice %119 {offsets = [1, 0, 0], sizes = [1, 8, 128], strides = [1, 1, 1]} : vector<2x8x128xf32> to vector<1x8x128xf32>
    %128 = vector.shape_cast %127 : vector<1x8x128xf32> to vector<8x128xf32>
    %129 = arith.mulf %126, %128 : vector<8x128xf32>
    %130 = arith.addf %124, %129 : vector<8x128xf32>
    %cst_43 = arith.constant 0.000000e+00 : f32
    %131 = vector.broadcast %cst_43 : f32 to vector<8x128xf32>
    %132 = arith.subf %131, %130 : vector<8x128xf32>
    %cst_44 = arith.constant dense<0.000000e+00> : vector<8xf32>
    %133 = vector.multi_reduction <add>, %132, %cst_44 [1] : vector<8x128xf32> to vector<8xf32>
    %134 = vector.shape_cast %133 : vector<8xf32> to vector<8x1xf32>
    %cst_45 = arith.constant dense<0.000000e+00> : vector<1xf32>
    %135 = vector.multi_reduction <add>, %134, %cst_45 [0] : vector<8x1xf32> to vector<1xf32>
    %136 = vector.shape_cast %135 : vector<1xf32> to vector<1x1xf32>
    %cst_46 = arith.constant 1.250000e-01 : f32
    %137 = vector.broadcast %cst_46 : f32 to vector<1x1xf32>
    %138 = arith.mulf %136, %137 : vector<1x1xf32>
    %c0_47 = arith.constant 0 : index
    %c0_48 = arith.constant 0 : index
    %139 = vector.load %arg7[%c0_47, %c0_48] : memref<1x1xf32, #tpu.memory_space<vmem>>, vector<1x1xf32>
    tpu.vector_store %arg7[%c0_47, %c0_48], %138 {strides = array<i32>} : memref<1x1xf32, #tpu.memory_space<vmem>>, vector<1x1xf32>,
    %c1_i32_49 = arith.constant 1 : i32
    %c0_i32_50 = arith.constant 0 : i32
    %140 = tpu.memref_slice %arg8[%1, %c0_i32_50] : memref<128x128xf32, #tpu.memory_space<any>> -> memref<8x128xf32, #tpu.memory_space<any>>
    %141 = tpu.memref_slice %arg11[%c1_i32_49] : memref<2x!tpu.dma_semaphore, #tpu.memory_space<semaphore_mem>> -> memref<1x!tpu.dma_semaphore, #tpu.memory_space<semaphore_mem>>
    %142 = tpu.memref_squeeze %141 : memref<1x!tpu.dma_semaphore, #tpu.memory_space<semaphore_mem>> -> memref<!tpu.dma_semaphore, #tpu.memory_space<semaphore_mem>>
    tpu.wait_dma2 semaphore(%142 : memref<!tpu.dma_semaphore, #tpu.memory_space<semaphore_mem>>) src(%arg10 : memref<8x128xf32, #tpu.memory_space<vmem>>) dst(%140 : memref<8x128xf32, #tpu.memory_space<any>>)
    return
  }
}

</mosaic_0001>

<llo_original>
// kernel: tpu_custom_call.1
$region0: #{tpu_custom_call.1}
  #allocation0 [shape = 'u32[]', space=smem, size = 0x4, offset = 0x4, fixed_abs, tag = 'smem constant byte address 0x4 - core index']
  #allocation1 [shape = 'u32[144,128]{1,0:T(1,128)}', space=vmem, size = 0x12000, scoped, tag = 'internal scratch']
  #allocation2 [shape = 'f32[128,128]{1,0:T(8,128)}', space=vmem, size = 0x10000, scoped, tag = 'scratch operand']
  #allocation3 [shape = 'f32[8,128]{1,0:T(8,128)}', space=vmem, size = 0x1000, scoped, tag = 'scratch operand']
  #allocation4 [shape = 's32[2]{0}', space=sflag, size = 0x8, scoped, tag = 'scratch operand']
  #allocation5 [shape = 's32[1]{0:T(128)S(6)}', space=smem, size = 0x200, scoped, tag = 'scoped memory for tpu_custom_call.1']
  #allocation10 [shape = 's32[]', space=sflag, size = 0x4, offset = 0, fixed_abs, tag = 'sflag constant byte address 0x0 - dummy sync flag']
  #allocation11 [shape = 's32[]', space=sflag, size = 0x4, offset = 0, fixed_abs, tag = 'sflag constant byte address 0x0 - dummy sync flag']
  #allocation12 [shape = 'u32[]', space=smem, size = 0x4, offset = 0x44, fixed_abs, tag = 'smem constant byte address 0x44 - assertion arg 0']
  #allocation13 [shape = 'u32[]', space=smem, size = 0x4, offset = 0x48, fixed_abs, tag = 'smem constant byte address 0x48 - assertion arg 1']
  #allocation14 [shape = 's32[]', space=sflag, size = 0x4, offset = 0, fixed_abs, tag = 'sflag constant byte address 0x0 - dummy sync flag']
  #allocation15 [shape = 's32[]', space=sflag, size = 0x4, offset = 0, fixed_abs, tag = 'sflag constant byte address 0x0 - dummy sync flag']
  %s0 = inlined_call_operand.vmem [shape: f32[8,1024], index: 0, kind: input, shape index: {}]
  %s1 = inlined_call_operand.vmem [shape: f32[8,1024], index: 1, kind: input, shape index: {}]
  %s2 = inlined_call_operand.hbm [shape: f32[1024,128], index: 2, kind: input, shape index: {}]
  %s3 = inlined_call_operand.vmem [shape: f32[1,128], index: 3, kind: input, shape index: {}]
  %s4 = inlined_call_operand.vmem [shape: f32[128,128], index: 4, kind: input, shape index: {}]
  %s5 = inlined_call_operand.hbm [shape: f32[128,128], index: 5, kind: input, shape index: {}, may-alias: {5,8}]
  %s6 = inlined_call_operand.<no memory space> [shape: s32[1], index: 6, kind: input, shape index: {}]
  %s7 = inlined_call_operand.hbm [shape: f32[1,1], index: 7, kind: output, shape index: {0}]
  %s8 = inlined_call_operand.hbm [shape: f32[128,128], index: 8, kind: output, shape index: {1}, may-alias: {5,8}]
  %9 = xla_tuple %s7, %s8
  %s10 = sld [smem:[#allocation0]]
  $region46: #{tpu_custom_call.1} parent=0
    _
  %s12 = ssub.s32 1, %s10
  %s13 = scalar_select 0, %s12, %s10
  %14 = sst [smem:[#allocation5]] %s6
  $region1: #{tpu_custom_call.1} parent=0
    #allocation6 [shape = 'u8[524288]{0}', space=vmem, size = 0x80000, scoped, tag = 'input window, operand 2, single buffered']
    #allocation7 [shape = 's32[1]{0}', space=sflag, size = 0x4, scoped, tag = 'scoped memory for tpu_custom_call.1']
    #allocation8 [shape = 's32[1]{0}', space=sflag, size = 0x4, scoped, tag = 'scoped memory for tpu_custom_call.1']
    #allocation9 [shape = 'u8[512]{0}', space=vmem, size = 0x400, scoped, tag = 'output window, operand 0, single buffered']
    %15 = vsyncpa [#allocation7], 0
    %16 = vsyncpa [#allocation8], 0
    // Predicated region
    $region2: #{tpu_custom_call.1} parent=1 // pred_check
      _
    $region3: #{tpu_custom_call.1} parent=1 // pred_check_branch
      %18 = sbr.rel (0) target = $region5
    $region4: #{tpu_custom_call.1} parent=1 // pred_region
      _
    $region5: #{tpu_custom_call.1} parent=1 // pred_fallthru
      _
    // Predicated region
    $region6: #{tpu_custom_call.1} parent=1 // pred_check
      _
    $region7: #{tpu_custom_call.1} parent=1 // pred_check_branch
      %20 = sbr.rel (0) target = $region9
    $region8: #{tpu_custom_call.1} parent=1 // pred_region
      _
    $region9: #{tpu_custom_call.1} parent=1 // pred_fallthru
      _
    // Predicated region
    $region10: #{tpu_custom_call.1} parent=1 // pred_check
      _
    $region11: #{tpu_custom_call.1} parent=1 // pred_check_branch
      %22 = sbr.rel (0) target = $region13
    $region12: #{tpu_custom_call.1} parent=1 // pred_region
      %s24 = ssub.s32 16384, 16384
      %25 = vsyncadd [#allocation7], %s24
      %s26 = sshll.u32 [#allocation6], 4
      %s27 = int_to_ptr.vmem [resolvable:$true] %s26
      %32 = dma.hbm_to_vmem [thread:$0]  %s2, 16384, %s27, [#allocation7], 128, 128, 8
    $region13: #{tpu_custom_call.1} parent=1 // pred_fallthru
      _
    // Predicated region
    $region14: #{tpu_custom_call.1} parent=1 // pred_check
      _
    $region15: #{tpu_custom_call.1} parent=1 // pred_check_branch
      %34 = sbr.rel (0) target = $region17
    $region16: #{tpu_custom_call.1} parent=1 // pred_region
      _
    $region17: #{tpu_custom_call.1} parent=1 // pred_fallthru
      _
    // Predicated region
    $region18: #{tpu_custom_call.1} parent=1 // pred_check
      _
    $region19: #{tpu_custom_call.1} parent=1 // pred_check_branch
      %36 = sbr.rel (0) target = $region21
    $region20: #{tpu_custom_call.1} parent=1 // pred_region
      _
    $region21: #{tpu_custom_call.1} parent=1 // pred_fallthru
      _
    // Predicated region
    $region22: #{tpu_custom_call.1} parent=1 // pred_check
      _
    $region23: #{tpu_custom_call.1} parent=1 // pred_check_branch
      %38 = sbr.rel (0) target = $region25
    $region24: #{tpu_custom_call.1} parent=1 // pred_region
      _
    $region25: #{tpu_custom_call.1} parent=1 // pred_fallthru
      _
    // Predicated region
    $region26: #{tpu_custom_call.1} parent=1 // pred_check
      _
    $region27: #{tpu_custom_call.1} parent=1 // pred_check_branch
      %40 = sbr.rel (0) target = $region29
    $region28: #{tpu_custom_call.1} parent=1 // pred_region
      %41 = dma.done [#allocation7], 16384
    $region29: #{tpu_custom_call.1} parent=1 // pred_fallthru
      _
    %s43 = sld [smem:[#allocation5]]
    // Predicated region
    $region30: #{tpu_custom_call.1} parent=1 // pred_check
      _
    $region31: #{tpu_custom_call.1} parent=1 // pred_check_branch
      %45 = sbr.rel target = $region33
    $region32: #{tpu_custom_call.1} parent=1 // pred_region
      %46 = sst [smem:[#allocation12]] [#allocation11]
      %47 = sst [smem:[#allocation13]] [#allocation10]
    $region33: #{tpu_custom_call.1} parent=1 // pred_fallthru
      _
    %49 = shalt.err (0)
    %s51 = sshll.u32 [#allocation2], 4
    %s52 = int_to_ptr.vmem [resolvable:$true] %s51
    %54 = dma.hbm_to_vmem [thread:$0]  %s5, 2048, %s52, [#allocation4]
    %v55 = vld [vmem:[%s0] sm:$0xff]
    %v56 = vld [vmem:[%s0 + $0x8] sm:$0xff]
    %v57 = vld [vmem:[%s0 + $0x10] sm:$0xff]
    %v58 = vld [vmem:[%s0 + $0x18] sm:$0xff]
    %v59 = vld [vmem:[%s0 + $0x20] sm:$0xff]
    %v60 = vld [vmem:[%s0 + $0x28] sm:$0xff]
    %v61 = vld [vmem:[%s0 + $0x30] sm:$0xff]
    %v62 = vld [vmem:[%s0 + $0x38] sm:$0xff]
    %v63 = vld [vmem:[%s1] sm:$0xff]
    %v64 = vld [vmem:[%s1 + $0x8] sm:$0xff]
    %v65 = vld [vmem:[%s1 + $0x10] sm:$0xff]
    %v66 = vld [vmem:[%s1 + $0x18] sm:$0xff]
    %v67 = vld [vmem:[%s1 + $0x20] sm:$0xff]
    %v68 = vld [vmem:[%s1 + $0x28] sm:$0xff]
    %v69 = vld [vmem:[%s1 + $0x30] sm:$0xff]
    %v70 = vld [vmem:[%s1 + $0x38] sm:$0xff]
    %v71 = vpack.c.bf16 %v63, %v55
    %v72 = vpack.c.bf16 %v64, %v56
    %v73 = vpack.c.bf16 %v65, %v57
    %v74 = vpack.c.bf16 %v66, %v58
    %v75 = vpack.c.bf16 %v67, %v59
    %v76 = vpack.c.bf16 %v68, %v60
    %v77 = vpack.c.bf16 %v69, %v61
    %v78 = vpack.c.bf16 %v70, %v62
    %v79 = vld [vmem:[#allocation6] sm:$0xff]
    %v80 = vld [vmem:[#allocation6 + $0x8] sm:$0xff]
    %v81 = vld [vmem:[#allocation6 + $0x10] sm:$0xff]
    %v82 = vld [vmem:[#allocation6 + $0x18] sm:$0xff]
    %v83 = vld [vmem:[#allocation6 + $0x20] sm:$0xff]
    %v84 = vld [vmem:[#allocation6 + $0x28] sm:$0xff]
    %v85 = vld [vmem:[#allocation6 + $0x30] sm:$0xff]
    %v86 = vld [vmem:[#allocation6 + $0x38] sm:$0xff]
    %v87 = vld [vmem:[#allocation6 + $0x40] sm:$0xff]
    %v88 = vld [vmem:[#allocation6 + $0x48] sm:$0xff]
    %v89 = vld [vmem:[#allocation6 + $0x50] sm:$0xff]
    %v90 = vld [vmem:[#allocation6 + $0x58] sm:$0xff]
    %v91 = vld [vmem:[#allocation6 + $0x60] sm:$0xff]
    %v92 = vld [vmem:[#allocation6 + $0x68] sm:$0xff]
    %v93 = vld [vmem:[#allocation6 + $0x70] sm:$0xff]
    %v94 = vld [vmem:[#allocation6 + $0x78] sm:$0xff]
    %v95 = vld [vmem:[#allocation6 + $0x80] sm:$0xff]
    %v96 = vld [vmem:[#allocation6 + $0x88] sm:$0xff]
    %v97 = vld [vmem:[#allocation6 + $0x90] sm:$0xff]
    %v98 = vld [vmem:[#allocation6 + $0x98] sm:$0xff]
    %v99 = vld [vmem:[#allocation6 + $0xa0] sm:$0xff]
    %v100 = vld [vmem:[#allocation6 + $0xa8] sm:$0xff]
    %v101 = vld [vmem:[#allocation6 + $0xb0] sm:$0xff]
    %v102 = vld [vmem:[#allocation6 + $0xb8] sm:$0xff]
    %v103 = vld [vmem:[#allocation6 + $0xc0] sm:$0xff]
    %v104 = vld [vmem:[#allocation6 + $0xc8] sm:$0xff]
    %v105 = vld [vmem:[#allocation6 + $0xd0] sm:$0xff]
    %v106 = vld [vmem:[#allocation6 + $0xd8] sm:$0xff]
    %v107 = vld [vmem:[#allocation6 + $0xe0] sm:$0xff]
    %v108 = vld [vmem:[#allocation6 + $0xe8] sm:$0xff]
    %v109 = vld [vmem:[#allocation6 + $0xf0] sm:$0xff]
    %v110 = vld [vmem:[#allocation6 + $0xf8] sm:$0xff]
    %v111 = vld [vmem:[#allocation6 + $0x100] sm:$0xff]
    %v112 = vld [vmem:[#allocation6 + $0x108] sm:$0xff]
    %v113 = vld [vmem:[#allocation6 + $0x110] sm:$0xff]
    %v114 = vld [vmem:[#allocation6 + $0x118] sm:$0xff]
    %v115 = vld [vmem:[#allocation6 + $0x120] sm:$0xff]
    %v116 = vld [vmem:[#allocation6 + $0x128] sm:$0xff]
    %v117 = vld [vmem:[#allocation6 + $0x130] sm:$0xff]
    %v118 = vld [vmem:[#allocation6 + $0x138] sm:$0xff]
    %v119 = vld [vmem:[#allocation6 + $0x140] sm:$0xff]
    %v120 = vld [vmem:[#allocation6 + $0x148] sm:$0xff]
    %v121 = vld [vmem:[#allocation6 + $0x150] sm:$0xff]
    %v122 = vld [vmem:[#allocation6 + $0x158] sm:$0xff]
    %v123 = vld [vmem:[#allocation6 + $0x160] sm:$0xff]
    %v124 = vld [vmem:[#allocation6 + $0x168] sm:$0xff]
    %v125 = vld [vmem:[#allocation6 + $0x170] sm:$0xff]
    %v126 = vld [vmem:[#allocation6 + $0x178] sm:$0xff]
    %v127 = vld [vmem:[#allocation6 + $0x180] sm:$0xff]
    %v128 = vld [vmem:[#allocation6 + $0x188] sm:$0xff]
    %v129 = vld [vmem:[#allocation6 + $0x190] sm:$0xff]
    %v130 = vld [vmem:[#allocation6 + $0x198] sm:$0xff]
    %v131 = vld [vmem:[#allocation6 + $0x1a0] sm:$0xff]
    %v132 = vld [vmem:[#allocation6 + $0x1a8] sm:$0xff]
    %v133 = vld [vmem:[#allocation6 + $0x1b0] sm:$0xff]
    %v134 = vld [vmem:[#allocation6 + $0x1b8] sm:$0xff]
    %v135 = vld [vmem:[#allocation6 + $0x1c0] sm:$0xff]
    %v136 = vld [vmem:[#allocation6 + $0x1c8] sm:$0xff]
    %v137 = vld [vmem:[#allocation6 + $0x1d0] sm:$0xff]
    %v138 = vld [vmem:[#allocation6 + $0x1d8] sm:$0xff]
    %v139 = vld [vmem:[#allocation6 + $0x1e0] sm:$0xff]
    %v140 = vld [vmem:[#allocation6 + $0x1e8] sm:$0xff]
    %v141 = vld [vmem:[#allocation6 + $0x1f0] sm:$0xff]
    %v142 = vld [vmem:[#allocation6 + $0x1f8] sm:$0xff]
    %v143 = vld [vmem:[#allocation6 + $0x200] sm:$0xff]
    %v144 = vld [vmem:[#allocation6 + $0x208] sm:$0xff]
    %v145 = vld [vmem:[#allocation6 + $0x210] sm:$0xff]
    %v146 = vld [vmem:[#allocation6 + $0x218] sm:$0xff]
    %v147 = vld [vmem:[#allocation6 + $0x220] sm:$0xff]
    %v148 = vld [vmem:[#allocation6 + $0x228] sm:$0xff]
    %v149 = vld [vmem:[#allocation6 + $0x230] sm:$0xff]
    %v150 = vld [vmem:[#allocation6 + $0x238] sm:$0xff]
    %v151 = vld [vmem:[#allocation6 + $0x240] sm:$0xff]
    %v152 = vld [vmem:[#allocation6 + $0x248] sm:$0xff]
    %v153 = vld [vmem:[#allocation6 + $0x250] sm:$0xff]
    %v154 = vld [vmem:[#allocation6 + $0x258] sm:$0xff]
    %v155 = vld [vmem:[#allocation6 + $0x260] sm:$0xff]
    %v156 = vld [vmem:[#allocation6 + $0x268] sm:$0xff]
    %v157 = vld [vmem:[#allocation6 + $0x270] sm:$0xff]
    %v158 = vld [vmem:[#allocation6 + $0x278] sm:$0xff]
    %v159 = vld [vmem:[#allocation6 + $0x280] sm:$0xff]
    %v160 = vld [vmem:[#allocation6 + $0x288] sm:$0xff]
    %v161 = vld [vmem:[#allocation6 + $0x290] sm:$0xff]
    %v162 = vld [vmem:[#allocation6 + $0x298] sm:$0xff]
    %v163 = vld [vmem:[#allocation6 + $0x2a0] sm:$0xff]
    %v164 = vld [vmem:[#allocation6 + $0x2a8] sm:$0xff]
    %v165 = vld [vmem:[#allocation6 + $0x2b0] sm:$0xff]
    %v166 = vld [vmem:[#allocation6 + $0x2b8] sm:$0xff]
    %v167 = vld [vmem:[#allocation6 + $0x2c0] sm:$0xff]
    %v168 = vld [vmem:[#allocation6 + $0x2c8] sm:$0xff]
    %v169 = vld [vmem:[#allocation6 + $0x2d0] sm:$0xff]
    %v170 = vld [vmem:[#allocation6 + $0x2d8] sm:$0xff]
    %v171 = vld [vmem:[#allocation6 + $0x2e0] sm:$0xff]
    %v172 = vld [vmem:[#allocation6 + $0x2e8] sm:$0xff]
    %v173 = vld [vmem:[#allocation6 + $0x2f0] sm:$0xff]
    %v174 = vld [vmem:[#allocation6 + $0x2f8] sm:$0xff]
    %v175 = vld [vmem:[#allocation6 + $0x300] sm:$0xff]
    %v176 = vld [vmem:[#allocation6 + $0x308] sm:$0xff]
    %v177 = vld [vmem:[#allocation6 + $0x310] sm:$0xff]
    %v178 = vld [vmem:[#allocation6 + $0x318] sm:$0xff]
    %v179 = vld [vmem:[#allocation6 + $0x320] sm:$0xff]
    %v180 = vld [vmem:[#allocation6 + $0x328] sm:$0xff]
    %v181 = vld [vmem:[#allocation6 + $0x330] sm:$0xff]
    %v182 = vld [vmem:[#allocation6 + $0x338] sm:$0xff]
    %v183 = vld [vmem:[#allocation6 + $0x340] sm:$0xff]
    %v184 = vld [vmem:[#allocation6 + $0x348] sm:$0xff]
    %v185 = vld [vmem:[#allocation6 + $0x350] sm:$0xff]
    %v186 = vld [vmem:[#allocation6 + $0x358] sm:$0xff]
    %v187 = vld [vmem:[#allocation6 + $0x360] sm:$0xff]
    %v188 = vld [vmem:[#allocation6 + $0x368] sm:$0xff]
    %v189 = vld [vmem:[#allocation6 + $0x370] sm:$0xff]
    %v190 = vld [vmem:[#allocation6 + $0x378] sm:$0xff]
    %v191 = vld [vmem:[#allocation6 + $0x380] sm:$0xff]
    %v192 = vld [vmem:[#allocation6 + $0x388] sm:$0xff]
    %v193 = vld [vmem:[#allocation6 + $0x390] sm:$0xff]
    %v194 = vld [vmem:[#allocation6 + $0x398] sm:$0xff]
    %v195 = vld [vmem:[#allocation6 + $0x3a0] sm:$0xff]
    %v196 = vld [vmem:[#allocation6 + $0x3a8] sm:$0xff]
    %v197 = vld [vmem:[#allocation6 + $0x3b0] sm:$0xff]
    %v198 = vld [vmem:[#allocation6 + $0x3b8] sm:$0xff]
    %v199 = vld [vmem:[#allocation6 + $0x3c0] sm:$0xff]
    %v200 = vld [vmem:[#allocation6 + $0x3c8] sm:$0xff]
    %v201 = vld [vmem:[#allocation6 + $0x3d0] sm:$0xff]
    %v202 = vld [vmem:[#allocation6 + $0x3d8] sm:$0xff]
    %v203 = vld [vmem:[#allocation6 + $0x3e0] sm:$0xff]
    %v204 = vld [vmem:[#allocation6 + $0x3e8] sm:$0xff]
    %v205 = vld [vmem:[#allocation6 + $0x3f0] sm:$0xff]
    %v206 = vld [vmem:[#allocation6 + $0x3f8] sm:$0xff]
    %v207 = vpack.c.bf16 %v80, %v79
    %v208 = vpack.c.bf16 %v82, %v81
    %v209 = vpack.c.bf16 %v84, %v83
    %v210 = vpack.c.bf16 %v86, %v85
    %v211 = vpack.c.bf16 %v88, %v87
    %v212 = vpack.c.bf16 %v90, %v89
    %v213 = vpack.c.bf16 %v92, %v91
    %v214 = vpack.c.bf16 %v94, %v93
    %v215 = vpack.c.bf16 %v96, %v95
    %v216 = vpack.c.bf16 %v98, %v97
    %v217 = vpack.c.bf16 %v100, %v99
    %v218 = vpack.c.bf16 %v102, %v101
    %v219 = vpack.c.bf16 %v104, %v103
    %v220 = vpack.c.bf16 %v106, %v105
    %v221 = vpack.c.bf16 %v108, %v107
    %v222 = vpack.c.bf16 %v110, %v109
    %v223 = vpack.c.bf16 %v112, %v111
    %v224 = vpack.c.bf16 %v114, %v113
    %v225 = vpack.c.bf16 %v116, %v115
    %v226 = vpack.c.bf16 %v118, %v117
    %v227 = vpack.c.bf16 %v120, %v119
    %v228 = vpack.c.bf16 %v122, %v121
    %v229 = vpack.c.bf16 %v124, %v123
    %v230 = vpack.c.bf16 %v126, %v125
    %v231 = vpack.c.bf16 %v128, %v127
    %v232 = vpack.c.bf16 %v130, %v129
    %v233 = vpack.c.bf16 %v132, %v131
    %v234 = vpack.c.bf16 %v134, %v133
    %v235 = vpack.c.bf16 %v136, %v135
    %v236 = vpack.c.bf16 %v138, %v137
    %v237 = vpack.c.bf16 %v140, %v139
    %v238 = vpack.c.bf16 %v142, %v141
    %v239 = vpack.c.bf16 %v144, %v143
    %v240 = vpack.c.bf16 %v146, %v145
    %v241 = vpack.c.bf16 %v148, %v147
    %v242 = vpack.c.bf16 %v150, %v149
    %v243 = vpack.c.bf16 %v152, %v151
    %v244 = vpack.c.bf16 %v154, %v153
    %v245 = vpack.c.bf16 %v156, %v155
    %v246 = vpack.c.bf16 %v158, %v157
    %v247 = vpack.c.bf16 %v160, %v159
    %v248 = vpack.c.bf16 %v162, %v161
    %v249 = vpack.c.bf16 %v164, %v163
    %v250 = vpack.c.bf16 %v166, %v165
    %v251 = vpack.c.bf16 %v168, %v167
    %v252 = vpack.c.bf16 %v170, %v169
    %v253 = vpack.c.bf16 %v172, %v171
    %v254 = vpack.c.bf16 %v174, %v173
    %v255 = vpack.c.bf16 %v176, %v175
    %v256 = vpack.c.bf16 %v178, %v177
    %v257 = vpack.c.bf16 %v180, %v179
    %v258 = vpack.c.bf16 %v182, %v181
    %v259 = vpack.c.bf16 %v184, %v183
    %v260 = vpack.c.bf16 %v186, %v185
    %v261 = vpack.c.bf16 %v188, %v187
    %v262 = vpack.c.bf16 %v190, %v189
    %v263 = vpack.c.bf16 %v192, %v191
    %v264 = vpack.c.bf16 %v194, %v193
    %v265 = vpack.c.bf16 %v196, %v195
    %v266 = vpack.c.bf16 %v198, %v197
    %v267 = vpack.c.bf16 %v200, %v199
    %v268 = vpack.c.bf16 %v202, %v201
    %v269 = vpack.c.bf16 %v204, %v203
    %v270 = vpack.c.bf16 %v206, %v205
    %v271 = vld [vmem:[%s3] sm:$0x1]
    %v273 = vlaneseq
    %v274 = vshrl.u32 %v273, 7
    %v275 = vsub.s32 0, %v274
    %v276 = vrot.slane %v271, %v275
    %278 = vmatprep.subr.bf16.mxu0 0
    %279 = vmatpush1.bf16.msra.mxu0 %v207
    %280 = vmatprep.subr.bf16.mxu0 0
    %281 = vmatpush1.bf16.msra.mxu0 %v208
    %282 = vmatprep.subr.bf16.mxu0 0
    %283 = vmatpush1.bf16.msra.mxu0 %v209
    %284 = vmatprep.subr.bf16.mxu0 0
    %285 = vmatpush1.bf16.msra.mxu0 %v210
    %286 = vmatprep.subr.bf16.mxu0 0
    %287 = vmatpush1.bf16.msra.mxu0 %v211
    %288 = vmatprep.subr.bf16.mxu0 0
    %289 = vmatpush1.bf16.msra.mxu0 %v212
    %290 = vmatprep.subr.bf16.mxu0 0
    %291 = vmatpush1.bf16.msra.mxu0 %v213
    %292 = vmatprep.subr.bf16.mxu0 0
    %293 = vmatpush1.bf16.msra.mxu0 %v214
    %294 = vmatprep.subr.bf16.mxu0 0
    %295 = vmatpush1.bf16.msra.mxu0 %v215
    %296 = vmatprep.subr.bf16.mxu0 0
    %297 = vmatpush1.bf16.msra.mxu0 %v216
    %298 = vmatprep.subr.bf16.mxu0 0
    %299 = vmatpush1.bf16.msra.mxu0 %v217
    %300 = vmatprep.subr.bf16.mxu0 0
    %301 = vmatpush1.bf16.msra.mxu0 %v218
    %302 = vmatprep.subr.bf16.mxu0 0
    %303 = vmatpush1.bf16.msra.mxu0 %v219
    %304 = vmatprep.subr.bf16.mxu0 0
    %305 = vmatpush1.bf16.msra.mxu0 %v220
    %306 = vmatprep.subr.bf16.mxu0 0
    %307 = vmatpush1.bf16.msra.mxu0 %v221
    %308 = vmatprep.subr.bf16.mxu0 0
    %309 = vmatpush1.bf16.msra.mxu0 %v222
    %310 = vmatprep.mubr.bf16.mxu0 %v72
    %311 = vmatmul.mubr.bf16.gmra.mrb[0].mxu0 %v71
    %v312 = vpop.f32.mrb[0].mxu0
    %v313 = vadd.f32 %v276, %v312
    %v314 = vpop.f32.mrb[0].mxu0
    %v315 = vpop.f32.mrb[0].mxu0
    %v316 = vadd.f32 %v276, %v315
    %v317 = vpop.f32.mrb[0].mxu0
    %318 = vdwg.mxu0
    %319 = vmatprep.subr.bf16.mxu0 0
    %320 = vmatpush1.bf16.msra.mxu0 %v223
    %321 = vmatprep.subr.bf16.mxu0 0
    %322 = vmatpush1.bf16.msra.mxu0 %v224
    %323 = vmatprep.subr.bf16.mxu0 0
    %324 = vmatpush1.bf16.msra.mxu0 %v225
    %325 = vmatprep.subr.bf16.mxu0 0
    %326 = vmatpush1.bf16.msra.mxu0 %v226
    %327 = vmatprep.subr.bf16.mxu0 0
    %328 = vmatpush1.bf16.msra.mxu0 %v227
    %329 = vmatprep.subr.bf16.mxu0 0
    %330 = vmatpush1.bf16.msra.mxu0 %v228
    %331 = vmatprep.subr.bf16.mxu0 0
    %332 = vmatpush1.bf16.msra.mxu0 %v229
    %333 = vmatprep.subr.bf16.mxu0 0
    %334 = vmatpush1.bf16.msra.mxu0 %v230
    %335 = vmatprep.subr.bf16.mxu0 0
    %336 = vmatpush1.bf16.msra.mxu0 %v231
    %337 = vmatprep.subr.bf16.mxu0 0
    %338 = vmatpush1.bf16.msra.mxu0 %v232
    %339 = vmatprep.subr.bf16.mxu0 0
    %340 = vmatpush1.bf16.msra.mxu0 %v233
    %341 = vmatprep.subr.bf16.mxu0 0
    %342 = vmatpush1.bf16.msra.mxu0 %v234
    %343 = vmatprep.subr.bf16.mxu0 0
    %344 = vmatpush1.bf16.msra.mxu0 %v235
    %345 = vmatprep.subr.bf16.mxu0 0
    %346 = vmatpush1.bf16.msra.mxu0 %v236
    %347 = vmatprep.subr.bf16.mxu0 0
    %348 = vmatpush1.bf16.msra.mxu0 %v237
    %349 = vmatprep.subr.bf16.mxu0 0
    %350 = vmatpush1.bf16.msra.mxu0 %v238
    %351 = vmatprep.mubr.bf16.mxu0 %v74
    %352 = vmatmul.mubr.bf16.gmra.mrb[0].mxu0 %v73
    %v353 = vpop.f32.mrb[0].mxu0
    %v354 = vadd.f32 %v313, %v353
    %v355 = vpop.f32.mrb[0].mxu0
    %v356 = vpop.f32.mrb[0].mxu0
    %v357 = vadd.f32 %v316, %v356
    %v358 = vpop.f32.mrb[0].mxu0
    %359 = vdwg.mxu0
    %360 = vmatprep.subr.bf16.mxu0 0
    %361 = vmatpush1.bf16.msra.mxu0 %v239
    %362 = vmatprep.subr.bf16.mxu0 0
    %363 = vmatpush1.bf16.msra.mxu0 %v240
    %364 = vmatprep.subr.bf16.mxu0 0
    %365 = vmatpush1.bf16.msra.mxu0 %v241
    %366 = vmatprep.subr.bf16.mxu0 0
    %367 = vmatpush1.bf16.msra.mxu0 %v242
    %368 = vmatprep.subr.bf16.mxu0 0
    %369 = vmatpush1.bf16.msra.mxu0 %v243
    %370 = vmatprep.subr.bf16.mxu0 0
    %371 = vmatpush1.bf16.msra.mxu0 %v244
    %372 = vmatprep.subr.bf16.mxu0 0
    %373 = vmatpush1.bf16.msra.mxu0 %v245
    %374 = vmatprep.subr.bf16.mxu0 0
    %375 = vmatpush1.bf16.msra.mxu0 %v246
    %376 = vmatprep.subr.bf16.mxu0 0
    %377 = vmatpush1.bf16.msra.mxu0 %v247
    %378 = vmatprep.subr.bf16.mxu0 0
    %379 = vmatpush1.bf16.msra.mxu0 %v248
    %380 = vmatprep.subr.bf16.mxu0 0
    %381 = vmatpush1.bf16.msra.mxu0 %v249
    %382 = vmatprep.subr.bf16.mxu0 0
    %383 = vmatpush1.bf16.msra.mxu0 %v250
    %384 = vmatprep.subr.bf16.mxu0 0
    %385 = vmatpush1.bf16.msra.mxu0 %v251
    %386 = vmatprep.subr.bf16.mxu0 0
    %387 = vmatpush1.bf16.msra.mxu0 %v252
    %388 = vmatprep.subr.bf16.mxu0 0
    %389 = vmatpush1.bf16.msra.mxu0 %v253
    %390 = vmatprep.subr.bf16.mxu0 0
    %391 = vmatpush1.bf16.msra.mxu0 %v254
    %392 = vmatprep.mubr.bf16.mxu0 %v76
    %393 = vmatmul.mubr.bf16.gmra.mrb[0].mxu0 %v75
    %v394 = vpop.f32.mrb[0].mxu0
    %v395 = vadd.f32 %v354, %v394
    %v396 = vpop.f32.mrb[0].mxu0
    %v397 = vpop.f32.mrb[0].mxu0
    %v398 = vadd.f32 %v357, %v397
    %v399 = vpop.f32.mrb[0].mxu0
    %400 = vdwg.mxu0
    %401 = vmatprep.subr.bf16.mxu0 0
    %402 = vmatpush1.bf16.msra.mxu0 %v255
    %403 = vmatprep.subr.bf16.mxu0 0
    %404 = vmatpush1.bf16.msra.mxu0 %v256
    %405 = vmatprep.subr.bf16.mxu0 0
    %406 = vmatpush1.bf16.msra.mxu0 %v257
    %407 = vmatprep.subr.bf16.mxu0 0
    %408 = vmatpush1.bf16.msra.mxu0 %v258
    %409 = vmatprep.subr.bf16.mxu0 0
    %410 = vmatpush1.bf16.msra.mxu0 %v259
    %411 = vmatprep.subr.bf16.mxu0 0
    %412 = vmatpush1.bf16.msra.mxu0 %v260
    %413 = vmatprep.subr.bf16.mxu0 0
    %414 = vmatpush1.bf16.msra.mxu0 %v261
    %415 = vmatprep.subr.bf16.mxu0 0
    %416 = vmatpush1.bf16.msra.mxu0 %v262
    %417 = vmatprep.subr.bf16.mxu0 0
    %418 = vmatpush1.bf16.msra.mxu0 %v263
    %419 = vmatprep.subr.bf16.mxu0 0
    %420 = vmatpush1.bf16.msra.mxu0 %v264
    %421 = vmatprep.subr.bf16.mxu0 0
    %422 = vmatpush1.bf16.msra.mxu0 %v265
    %423 = vmatprep.subr.bf16.mxu0 0
    %424 = vmatpush1.bf16.msra.mxu0 %v266
    %425 = vmatprep.subr.bf16.mxu0 0
    %426 = vmatpush1.bf16.msra.mxu0 %v267
    %427 = vmatprep.subr.bf16.mxu0 0
    %428 = vmatpush1.bf16.msra.mxu0 %v268
    %429 = vmatprep.subr.bf16.mxu0 0
    %430 = vmatpush1.bf16.msra.mxu0 %v269
    %431 = vmatprep.subr.bf16.mxu0 0
    %432 = vmatpush1.bf16.msra.mxu0 %v270
    %433 = vmatprep.mubr.bf16.mxu0 %v78
    %434 = vmatmul.mubr.bf16.gmra.mrb[0].mxu0 %v77
    %v435 = vpop.f32.mrb[0].mxu0
    %v436 = vadd.f32 %v395, %v435
    %v437 = vpop.f32.mrb[0].mxu0
    %v438 = vpop.f32.mrb[0].mxu0
    %v439 = vadd.f32 %v398, %v438
    %v440 = vpop.f32.mrb[0].mxu0
    %441 = vdwg.mxu0
    %442 = vst [vmem:[#allocation3] sm:$0xff] %v436
    %v443 = vmul.f32 %v436, %v436
    %v444 = vmul.f32 %v439, %v439
    %445 = vadd.xlane.f32.xlu0 %v443
    %v446 = vpop.xlane.xlu0 %445
    %447 = vadd.xlane.f32.xlu0 %v444
    %v448 = vpop.xlane.xlu0 %447
    %v449 = vadd.f32 %v446, 1e-24
    %v450 = vadd.f32 %v448, 1e-24
    %v451 = vrsqrt.pop %v449
    %v452 = vrsqrt.pop %v450
    %v453 = vmul.f32 %v436, %v451
    %v454 = vmul.f32 %v439, %v452
    %v455 = vld [vmem:[%s4] sm:$0xff]
    %v456 = vld [vmem:[%s4 + $0x8] sm:$0xff]
    %v457 = vld [vmem:[%s4 + $0x10] sm:$0xff]
    %v458 = vld [vmem:[%s4 + $0x18] sm:$0xff]
    %v459 = vld [vmem:[%s4 + $0x20] sm:$0xff]
    %v460 = vld [vmem:[%s4 + $0x28] sm:$0xff]
    %v461 = vld [vmem:[%s4 + $0x30] sm:$0xff]
    %v462 = vld [vmem:[%s4 + $0x38] sm:$0xff]
    %v463 = vld [vmem:[%s4 + $0x40] sm:$0xff]
    %v464 = vld [vmem:[%s4 + $0x48] sm:$0xff]
    %v465 = vld [vmem:[%s4 + $0x50] sm:$0xff]
    %v466 = vld [vmem:[%s4 + $0x58] sm:$0xff]
    %v467 = vld [vmem:[%s4 + $0x60] sm:$0xff]
    %v468 = vld [vmem:[%s4 + $0x68] sm:$0xff]
    %v469 = vld [vmem:[%s4 + $0x70] sm:$0xff]
    %v470 = vld [vmem:[%s4 + $0x78] sm:$0xff]
    %v471 = vmul.f32 %v455, %v455
    %v472 = vmul.f32 %v456, %v456
    %v473 = vmul.f32 %v457, %v457
    %v474 = vmul.f32 %v458, %v458
    %v475 = vmul.f32 %v459, %v459
    %v476 = vmul.f32 %v460, %v460
    %v477 = vmul.f32 %v461, %v461
    %v478 = vmul.f32 %v462, %v462
    %v479 = vmul.f32 %v463, %v463
    %v480 = vmul.f32 %v464, %v464
    %v481 = vmul.f32 %v465, %v465
    %v482 = vmul.f32 %v466, %v466
    %v483 = vmul.f32 %v467, %v467
    %v484 = vmul.f32 %v468, %v468
    %v485 = vmul.f32 %v469, %v469
    %v486 = vmul.f32 %v470, %v470
    %487 = vadd.xlane.f32.xlu0 %v471
    %v488 = vpop.xlane.xlu0 %487
    %489 = vadd.xlane.f32.xlu0 %v472
    %v490 = vpop.xlane.xlu0 %489
    %491 = vadd.xlane.f32.xlu0 %v473
    %v492 = vpop.xlane.xlu0 %491
    %493 = vadd.xlane.f32.xlu0 %v474
    %v494 = vpop.xlane.xlu0 %493
    %495 = vadd.xlane.f32.xlu0 %v475
    %v496 = vpop.xlane.xlu0 %495
    %497 = vadd.xlane.f32.xlu0 %v476
    %v498 = vpop.xlane.xlu0 %497
    %499 = vadd.xlane.f32.xlu0 %v477
    %v500 = vpop.xlane.xlu0 %499
    %501 = vadd.xlane.f32.xlu0 %v478
    %v502 = vpop.xlane.xlu0 %501
    %503 = vadd.xlane.f32.xlu0 %v479
    %v504 = vpop.xlane.xlu0 %503
    %505 = vadd.xlane.f32.xlu0 %v480
    %v506 = vpop.xlane.xlu0 %505
    %507 = vadd.xlane.f32.xlu0 %v481
    %v508 = vpop.xlane.xlu0 %507
    %509 = vadd.xlane.f32.xlu0 %v482
    %v510 = vpop.xlane.xlu0 %509
    %511 = vadd.xlane.f32.xlu0 %v483
    %v512 = vpop.xlane.xlu0 %511
    %513 = vadd.xlane.f32.xlu0 %v484
    %v514 = vpop.xlane.xlu0 %513
    %515 = vadd.xlane.f32.xlu0 %v485
    %v516 = vpop.xlane.xlu0 %515
    %517 = vadd.xlane.f32.xlu0 %v486
    %v518 = vpop.xlane.xlu0 %517
    %v519 = vadd.f32 %v488, 1e-24
    %v520 = vadd.f32 %v490, 1e-24
    %v521 = vadd.f32 %v492, 1e-24
    %v522 = vadd.f32 %v494, 1e-24
    %v523 = vadd.f32 %v496, 1e-24
    %v524 = vadd.f32 %v498, 1e-24
    %v525 = vadd.f32 %v500, 1e-24
    %v526 = vadd.f32 %v502, 1e-24
    %v527 = vadd.f32 %v504, 1e-24
    %v528 = vadd.f32 %v506, 1e-24
    %v529 = vadd.f32 %v508, 1e-24
    %v530 = vadd.f32 %v510, 1e-24
    %v531 = vadd.f32 %v512, 1e-24
    %v532 = vadd.f32 %v514, 1e-24
    %v533 = vadd.f32 %v516, 1e-24
    %v534 = vadd.f32 %v518, 1e-24
    %v535 = vrsqrt.pop %v519
    %v536 = vrsqrt.pop %v520
    %v537 = vrsqrt.pop %v521
    %v538 = vrsqrt.pop %v522
    %v539 = vrsqrt.pop %v523
    %v540 = vrsqrt.pop %v524
    %v541 = vrsqrt.pop %v525
    %v542 = vrsqrt.pop %v526
    %v543 = vrsqrt.pop %v527
    %v544 = vrsqrt.pop %v528
    %v545 = vrsqrt.pop %v529
    %v546 = vrsqrt.pop %v530
    %v547 = vrsqrt.pop %v531
    %v548 = vrsqrt.pop %v532
    %v549 = vrsqrt.pop %v533
    %v550 = vrsqrt.pop %v534
    %v551 = vmul.f32 %v455, %v535
    %v552 = vmul.f32 %v456, %v536
    %v553 = vmul.f32 %v457, %v537
    %v554 = vmul.f32 %v458, %v538
    %v555 = vmul.f32 %v459, %v539
    %v556 = vmul.f32 %v460, %v540
    %v557 = vmul.f32 %v461, %v541
    %v558 = vmul.f32 %v462, %v542
    %v559 = vmul.f32 %v463, %v543
    %v560 = vmul.f32 %v464, %v544
    %v561 = vmul.f32 %v465, %v545
    %v562 = vmul.f32 %v466, %v546
    %v563 = vmul.f32 %v467, %v547
    %v564 = vmul.f32 %v468, %v548
    %v565 = vmul.f32 %v469, %v549
    %v566 = vmul.f32 %v470, %v550
    %s567 = smul.u32 128, 1
    %s568 = sshll.u32 %s567, 4
    %569 = dma.done [#allocation4], %s568
    %s570 = smul.addr %s43, 16
    %s571 = scalar_lea.hbm %s8, %s570
    %s572 = scalar_lea.sflag [#allocation4], 1
    // Predicated region
    $region34: #{tpu_custom_call.1} parent=1 // pred_check
      _
    $region35: #{tpu_custom_call.1} parent=1 // pred_check_branch
      %574 = sbr.rel target = $region37
    $region36: #{tpu_custom_call.1} parent=1 // pred_region
      %575 = sst [smem:[#allocation12]] [#allocation15]
      %576 = sst [smem:[#allocation13]] [#allocation14]
    $region37: #{tpu_custom_call.1} parent=1 // pred_fallthru
      _
    %578 = shalt.err (0)
    %s580 = sshll.u32 [#allocation3], 4
    %s581 = int_to_ptr.vmem [resolvable:$true] %s580
    %583 = dma.vmem_to_hbm [thread:$0]  %s581, 128, %s571, %s572
    %v584 = vld [vmem:[#allocation2] sm:$0xff]
    %v585 = vld [vmem:[#allocation2 + $0x8] sm:$0xff]
    %v586 = vld [vmem:[#allocation2 + $0x10] sm:$0xff]
    %v587 = vld [vmem:[#allocation2 + $0x18] sm:$0xff]
    %v588 = vld [vmem:[#allocation2 + $0x20] sm:$0xff]
    %v589 = vld [vmem:[#allocation2 + $0x28] sm:$0xff]
    %v590 = vld [vmem:[#allocation2 + $0x30] sm:$0xff]
    %v591 = vld [vmem:[#allocation2 + $0x38] sm:$0xff]
    %v592 = vld [vmem:[#allocation2 + $0x40] sm:$0xff]
    %v593 = vld [vmem:[#allocation2 + $0x48] sm:$0xff]
    %v594 = vld [vmem:[#allocation2 + $0x50] sm:$0xff]
    %v595 = vld [vmem:[#allocation2 + $0x58] sm:$0xff]
    %v596 = vld [vmem:[#allocation2 + $0x60] sm:$0xff]
    %v597 = vld [vmem:[#allocation2 + $0x68] sm:$0xff]
    %v598 = vld [vmem:[#allocation2 + $0x70] sm:$0xff]
    %v599 = vld [vmem:[#allocation2 + $0x78] sm:$0xff]
    %v600 = vmul.f32 %v584, %v584
    %v601 = vmul.f32 %v585, %v585
    %v602 = vmul.f32 %v586, %v586
    %v603 = vmul.f32 %v587, %v587
    %v604 = vmul.f32 %v588, %v588
    %v605 = vmul.f32 %v589, %v589
    %v606 = vmul.f32 %v590, %v590
    %v607 = vmul.f32 %v591, %v591
    %v608 = vmul.f32 %v592, %v592
    %v609 = vmul.f32 %v593, %v593
    %v610 = vmul.f32 %v594, %v594
    %v611 = vmul.f32 %v595, %v595
    %v612 = vmul.f32 %v596, %v596
    %v613 = vmul.f32 %v597, %v597
    %v614 = vmul.f32 %v598, %v598
    %v615 = vmul.f32 %v599, %v599
    %616 = vadd.xlane.f32.xlu0 %v600
    %v617 = vpop.xlane.xlu0 %616
    %618 = vadd.xlane.f32.xlu0 %v601
    %v619 = vpop.xlane.xlu0 %618
    %620 = vadd.xlane.f32.xlu0 %v602
    %v621 = vpop.xlane.xlu0 %620
    %622 = vadd.xlane.f32.xlu0 %v603
    %v623 = vpop.xlane.xlu0 %622
    %624 = vadd.xlane.f32.xlu0 %v604
    %v625 = vpop.xlane.xlu0 %624
    %626 = vadd.xlane.f32.xlu0 %v605
    %v627 = vpop.xlane.xlu0 %626
    %628 = vadd.xlane.f32.xlu0 %v606
    %v629 = vpop.xlane.xlu0 %628
    %630 = vadd.xlane.f32.xlu0 %v607
    %v631 = vpop.xlane.xlu0 %630
    %632 = vadd.xlane.f32.xlu0 %v608
    %v633 = vpop.xlane.xlu0 %632
    %634 = vadd.xlane.f32.xlu0 %v609
    %v635 = vpop.xlane.xlu0 %634
    %636 = vadd.xlane.f32.xlu0 %v610
    %v637 = vpop.xlane.xlu0 %636
    %638 = vadd.xlane.f32.xlu0 %v611
    %v639 = vpop.xlane.xlu0 %638
    %640 = vadd.xlane.f32.xlu0 %v612
    %v641 = vpop.xlane.xlu0 %640
    %642 = vadd.xlane.f32.xlu0 %v613
    %v643 = vpop.xlane.xlu0 %642
    %644 = vadd.xlane.f32.xlu0 %v614
    %v645 = vpop.xlane.xlu0 %644
    %646 = vadd.xlane.f32.xlu0 %v615
    %v647 = vpop.xlane.xlu0 %646
    %v648 = vadd.f32 %v617, 1e-24
    %v649 = vadd.f32 %v619, 1e-24
    %v650 = vadd.f32 %v621, 1e-24
    %v651 = vadd.f32 %v623, 1e-24
    %v652 = vadd.f32 %v625, 1e-24
    %v653 = vadd.f32 %v627, 1e-24
    %v654 = vadd.f32 %v629, 1e-24
    %v655 = vadd.f32 %v631, 1e-24
    %v656 = vadd.f32 %v633, 1e-24
    %v657 = vadd.f32 %v635, 1e-24
    %v658 = vadd.f32 %v637, 1e-24
    %v659 = vadd.f32 %v639, 1e-24
    %v660 = vadd.f32 %v641, 1e-24
    %v661 = vadd.f32 %v643, 1e-24
    %v662 = vadd.f32 %v645, 1e-24
    %v663 = vadd.f32 %v647, 1e-24
    %v664 = vrsqrt.pop %v648
    %v665 = vrsqrt.pop %v649
    %v666 = vrsqrt.pop %v650
    %v667 = vrsqrt.pop %v651
    %v668 = vrsqrt.pop %v652
    %v669 = vrsqrt.pop %v653
    %v670 = vrsqrt.pop %v654
    %v671 = vrsqrt.pop %v655
    %v672 = vrsqrt.pop %v656
    %v673 = vrsqrt.pop %v657
    %v674 = vrsqrt.pop %v658
    %v675 = vrsqrt.pop %v659
    %v676 = vrsqrt.pop %v660
    %v677 = vrsqrt.pop %v661
    %v678 = vrsqrt.pop %v662
    %v679 = vrsqrt.pop %v663
    %v680 = vmul.f32 %v584, %v664
    %v681 = vmul.f32 %v585, %v665
    %v682 = vmul.f32 %v586, %v666
    %v683 = vmul.f32 %v587, %v667
    %v684 = vmul.f32 %v588, %v668
    %v685 = vmul.f32 %v589, %v669
    %v686 = vmul.f32 %v590, %v670
    %v687 = vmul.f32 %v591, %v671
    %v688 = vmul.f32 %v592, %v672
    %v689 = vmul.f32 %v593, %v673
    %v690 = vmul.f32 %v594, %v674
    %v691 = vmul.f32 %v595, %v675
    %v692 = vmul.f32 %v596, %v676
    %v693 = vmul.f32 %v597, %v677
    %v694 = vmul.f32 %v598, %v678
    %v695 = vmul.f32 %v599, %v679
    %696 = vmatprep.subr.mxu0 0.0
    %697 = vmatpush1.xpose.msra.mxu0 %v551
    %698 = vmatprep.subr.mxu0 0.0
    %699 = vmatpush1.xpose.msra.mxu0 %v552
    %700 = vmatprep.subr.mxu0 0.0
    %701 = vmatpush1.xpose.msra.mxu0 %v553
    %702 = vmatprep.subr.mxu0 0.0
    %703 = vmatpush1.xpose.msra.mxu0 %v554
    %704 = vmatprep.subr.mxu0 0.0
    %705 = vmatpush1.xpose.msra.mxu0 %v555
    %706 = vmatprep.subr.mxu0 0.0
    %707 = vmatpush1.xpose.msra.mxu0 %v556
    %708 = vmatprep.subr.mxu0 0.0
    %709 = vmatpush1.xpose.msra.mxu0 %v557
    %710 = vmatprep.subr.mxu0 0.0
    %711 = vmatpush1.xpose.msra.mxu0 %v558
    %712 = vmatprep.subr.mxu0 0.0
    %713 = vmatpush1.xpose.msra.mxu0 %v559
    %714 = vmatprep.subr.mxu0 0.0
    %715 = vmatpush1.xpose.msra.mxu0 %v560
    %716 = vmatprep.subr.mxu0 0.0
    %717 = vmatpush1.xpose.msra.mxu0 %v561
    %718 = vmatprep.subr.mxu0 0.0
    %719 = vmatpush1.xpose.msra.mxu0 %v562
    %720 = vmatprep.subr.mxu0 0.0
    %721 = vmatpush1.xpose.msra.mxu0 %v563
    %722 = vmatprep.subr.mxu0 0.0
    %723 = vmatpush1.xpose.msra.mxu0 %v564
    %724 = vmatprep.subr.mxu0 0.0
    %725 = vmatpush1.xpose.msra.mxu0 %v565
    %726 = vmatprep.subr.mxu0 0.0
    %727 = vmatpush1.xpose.msra.mxu0 %v566
    %728 = vmatprep.subr.mxu0 0.0
    %729 = vmatpush1.xpose.msra.mxu0 0.0
    %730 = vmatprep.subr.mxu0 0.0
    %731 = vmatpush1.xpose.msra.mxu0 0.0
    %732 = vmatprep.subr.mxu0 0.0
    %733 = vmatpush1.xpose.msra.mxu0 0.0
    %734 = vmatprep.subr.mxu0 0.0
    %735 = vmatpush1.xpose.msra.mxu0 0.0
    %736 = vmatprep.subr.mxu0 0.0
    %737 = vmatpush1.xpose.msra.mxu0 0.0
    %738 = vmatprep.subr.mxu0 0.0
    %739 = vmatpush1.xpose.msra.mxu0 0.0
    %740 = vmatprep.subr.mxu0 0.0
    %741 = vmatpush1.xpose.msra.mxu0 0.0
    %742 = vmatprep.subr.mxu0 0.0
    %743 = vmatpush1.xpose.msra.mxu0 0.0
    %744 = vmatprep.subr.mxu0 0.0
    %745 = vmatpush1.xpose.msra.mxu0 0.0
    %746 = vmatprep.subr.mxu0 0.0
    %747 = vmatpush1.xpose.msra.mxu0 0.0
    %748 = vmatprep.subr.mxu0 0.0
    %749 = vmatpush1.xpose.msra.mxu0 0.0
    %750 = vmatprep.subr.mxu0 0.0
    %751 = vmatpush1.xpose.msra.mxu0 0.0
    %752 = vmatprep.subr.mxu0 0.0
    %753 = vmatpush1.xpose.msra.mxu0 0.0
    %754 = vmatprep.subr.mxu0 0.0
    %755 = vmatpush1.xpose.msra.mxu0 0.0
    %756 = vmatprep.subr.mxu0 0.0
    %757 = vmatpush1.xpose.msra.mxu0 0.0
    %758 = vmatprep.subr.mxu0 0.0
    %759 = vmatpush1.xpose.msra.mxu0 0.0
    %760 = vmatprep.mubr.f32.mxu0 0.0
    %761 = vmatmul.mubr.f32.gmra.mrb[0].mxu0 %v453
    %v762 = vpop.f32.mrb[0].mxu0
    %v763 = vadd.f32 0.0, %v762
    %v764 = vpop.f32.mrb[0].mxu0
    %765 = vmatprep.mubr.f32.mxu0 0.0
    %766 = vmatmul.mubr.f32.gmra.mrb[0].mxu0 %v454
    %v767 = vpop.f32.mrb[0].mxu0
    %v768 = vadd.f32 0.0, %v767
    %v769 = vpop.f32.mrb[0].mxu0
    %770 = vdwg.mxu0
    %771 = vmatprep.subr.mxu0 0.0
    %772 = vmatpush1.xpose.msra.mxu0 %v551
    %773 = vmatprep.subr.mxu0 0.0
    %774 = vmatpush1.xpose.msra.mxu0 %v552
    %775 = vmatprep.subr.mxu0 0.0
    %776 = vmatpush1.xpose.msra.mxu0 %v553
    %777 = vmatprep.subr.mxu0 0.0
    %778 = vmatpush1.xpose.msra.mxu0 %v554
    %779 = vmatprep.subr.mxu0 0.0
    %780 = vmatpush1.xpose.msra.mxu0 %v555
    %781 = vmatprep.subr.mxu0 0.0
    %782 = vmatpush1.xpose.msra.mxu0 %v556
    %783 = vmatprep.subr.mxu0 0.0
    %784 = vmatpush1.xpose.msra.mxu0 %v557
    %785 = vmatprep.subr.mxu0 0.0
    %786 = vmatpush1.xpose.msra.mxu0 %v558
    %787 = vmatprep.subr.mxu0 0.0
    %788 = vmatpush1.xpose.msra.mxu0 %v559
    %789 = vmatprep.subr.mxu0 0.0
    %790 = vmatpush1.xpose.msra.mxu0 %v560
    %791 = vmatprep.subr.mxu0 0.0
    %792 = vmatpush1.xpose.msra.mxu0 %v561
    %793 = vmatprep.subr.mxu0 0.0
    %794 = vmatpush1.xpose.msra.mxu0 %v562
    %795 = vmatprep.subr.mxu0 0.0
    %796 = vmatpush1.xpose.msra.mxu0 %v563
    %797 = vmatprep.subr.mxu0 0.0
    %798 = vmatpush1.xpose.msra.mxu0 %v564
    %799 = vmatprep.subr.mxu0 0.0
    %800 = vmatpush1.xpose.msra.mxu0 %v565
    %801 = vmatprep.subr.mxu0 0.0
    %802 = vmatpush1.xpose.msra.mxu0 %v566
    %803 = vmatprep.subr.mxu0 0.0
    %804 = vmatpush1.xpose.msra.mxu0 0.0
    %805 = vmatprep.subr.mxu0 0.0
    %806 = vmatpush1.xpose.msra.mxu0 0.0
    %807 = vmatprep.subr.mxu0 0.0
    %808 = vmatpush1.xpose.msra.mxu0 0.0
    %809 = vmatprep.subr.mxu0 0.0
    %810 = vmatpush1.xpose.msra.mxu0 0.0
    %811 = vmatprep.subr.mxu0 0.0
    %812 = vmatpush1.xpose.msra.mxu0 0.0
    %813 = vmatprep.subr.mxu0 0.0
    %814 = vmatpush1.xpose.msra.mxu0 0.0
    %815 = vmatprep.subr.mxu0 0.0
    %816 = vmatpush1.xpose.msra.mxu0 0.0
    %817 = vmatprep.subr.mxu0 0.0
    %818 = vmatpush1.xpose.msra.mxu0 0.0
    %819 = vmatprep.subr.mxu0 0.0
    %820 = vmatpush1.xpose.msra.mxu0 0.0
    %821 = vmatprep.subr.mxu0 0.0
    %822 = vmatpush1.xpose.msra.mxu0 0.0
    %823 = vmatprep.subr.mxu0 0.0
    %824 = vmatpush1.xpose.msra.mxu0 0.0
    %825 = vmatprep.subr.mxu0 0.0
    %826 = vmatpush1.xpose.msra.mxu0 0.0
    %827 = vmatprep.subr.mxu0 0.0
    %828 = vmatpush1.xpose.msra.mxu0 0.0
    %829 = vmatprep.subr.mxu0 0.0
    %830 = vmatpush1.xpose.msra.mxu0 0.0
    %831 = vmatprep.subr.mxu0 0.0
    %832 = vmatpush1.xpose.msra.mxu0 0.0
    %833 = vmatprep.subr.mxu0 0.0
    %834 = vmatpush1.xpose.msra.mxu0 0.0
    %835 = vmatprep.mubr.f32.mxu0 0.0
    %836 = vmatmul.mubr.f32.gmra.mrb[0].mxu0 %v680
    %v837 = vpop.f32.mrb[0].mxu0
    %v838 = vadd.f32 0.0, %v837
    %v839 = vpop.f32.mrb[0].mxu0
    %840 = vmatprep.mubr.f32.mxu0 0.0
    %841 = vmatmul.mubr.f32.gmra.mrb[0].mxu0 %v681
    %v842 = vpop.f32.mrb[0].mxu0
    %v843 = vadd.f32 0.0, %v842
    %v844 = vpop.f32.mrb[0].mxu0
    %845 = vmatprep.mubr.f32.mxu0 0.0
    %846 = vmatmul.mubr.f32.gmra.mrb[0].mxu0 %v682
    %v847 = vpop.f32.mrb[0].mxu0
    %v848 = vadd.f32 0.0, %v847
    %v849 = vpop.f32.mrb[0].mxu0
    %850 = vmatprep.mubr.f32.mxu0 0.0
    %851 = vmatmul.mubr.f32.gmra.mrb[0].mxu0 %v683
    %v852 = vpop.f32.mrb[0].mxu0
    %v853 = vadd.f32 0.0, %v852
    %v854 = vpop.f32.mrb[0].mxu0
    %855 = vmatprep.mubr.f32.mxu0 0.0
    %856 = vmatmul.mubr.f32.gmra.mrb[0].mxu0 %v684
    %v857 = vpop.f32.mrb[0].mxu0
    %v858 = vadd.f32 0.0, %v857
    %v859 = vpop.f32.mrb[0].mxu0
    %860 = vmatprep.mubr.f32.mxu0 0.0
    %861 = vmatmul.mubr.f32.gmra.mrb[0].mxu0 %v685
    %v862 = vpop.f32.mrb[0].mxu0
    %v863 = vadd.f32 0.0, %v862
    %v864 = vpop.f32.mrb[0].mxu0
    %865 = vmatprep.mubr.f32.mxu0 0.0
    %866 = vmatmul.mubr.f32.gmra.mrb[0].mxu0 %v686
    %v867 = vpop.f32.mrb[0].mxu0
    %v868 = vadd.f32 0.0, %v867
    %v869 = vpop.f32.mrb[0].mxu0
    %870 = vmatprep.mubr.f32.mxu0 0.0
    %871 = vmatmul.mubr.f32.gmra.mrb[0].mxu0 %v687
    %v872 = vpop.f32.mrb[0].mxu0
    %v873 = vadd.f32 0.0, %v872
    %v874 = vpop.f32.mrb[0].mxu0
    %875 = vmatprep.mubr.f32.mxu0 0.0
    %876 = vmatmul.mubr.f32.gmra.mrb[0].mxu0 %v688
    %v877 = vpop.f32.mrb[0].mxu0
    %v878 = vadd.f32 0.0, %v877
    %v879 = vpop.f32.mrb[0].mxu0
    %880 = vmatprep.mubr.f32.mxu0 0.0
    %881 = vmatmul.mubr.f32.gmra.mrb[0].mxu0 %v689
    %v882 = vpop.f32.mrb[0].mxu0
    %v883 = vadd.f32 0.0, %v882
    %v884 = vpop.f32.mrb[0].mxu0
    %885 = vmatprep.mubr.f32.mxu0 0.0
    %886 = vmatmul.mubr.f32.gmra.mrb[0].mxu0 %v690
    %v887 = vpop.f32.mrb[0].mxu0
    %v888 = vadd.f32 0.0, %v887
    %v889 = vpop.f32.mrb[0].mxu0
    %890 = vmatprep.mubr.f32.mxu0 0.0
    %891 = vmatmul.mubr.f32.gmra.mrb[0].mxu0 %v691
    %v892 = vpop.f32.mrb[0].mxu0
    %v893 = vadd.f32 0.0, %v892
    %v894 = vpop.f32.mrb[0].mxu0
    %895 = vmatprep.mubr.f32.mxu0 0.0
    %896 = vmatmul.mubr.f32.gmra.mrb[0].mxu0 %v692
    %v897 = vpop.f32.mrb[0].mxu0
    %v898 = vadd.f32 0.0, %v897
    %v899 = vpop.f32.mrb[0].mxu0
    %900 = vmatprep.mubr.f32.mxu0 0.0
    %901 = vmatmul.mubr.f32.gmra.mrb[0].mxu0 %v693
    %v902 = vpop.f32.mrb[0].mxu0
    %v903 = vadd.f32 0.0, %v902
    %v904 = vpop.f32.mrb[0].mxu0
    %905 = vmatprep.mubr.f32.mxu0 0.0
    %906 = vmatmul.mubr.f32.gmra.mrb[0].mxu0 %v694
    %v907 = vpop.f32.mrb[0].mxu0
    %v908 = vadd.f32 0.0, %v907
    %v909 = vpop.f32.mrb[0].mxu0
    %910 = vmatprep.mubr.f32.mxu0 0.0
    %911 = vmatmul.mubr.f32.gmra.mrb[0].mxu0 %v695
    %v912 = vpop.f32.mrb[0].mxu0
    %v913 = vadd.f32 0.0, %v912
    %v914 = vpop.f32.mrb[0].mxu0
    %915 = vdwg.mxu0
    %v916 = vmul.f32 %v763, 20.0
    %v917 = vmul.f32 %v838, 20.0
    %v918 = vmul.f32 %v843, 20.0
    %v919 = vmul.f32 %v848, 20.0
    %v920 = vmul.f32 %v853, 20.0
    %v921 = vmul.f32 %v858, 20.0
    %v922 = vmul.f32 %v863, 20.0
    %v923 = vmul.f32 %v868, 20.0
    %v924 = vmul.f32 %v873, 20.0
    %v925 = vmul.f32 %v878, 20.0
    %v926 = vmul.f32 %v883, 20.0
    %v927 = vmul.f32 %v888, 20.0
    %v928 = vmul.f32 %v893, 20.0
    %v929 = vmul.f32 %v898, 20.0
    %v930 = vmul.f32 %v903, 20.0
    %v931 = vmul.f32 %v908, 20.0
    %v932 = vmul.f32 %v913, 20.0
    %v933 = vmul.f32 %v768, 20.0
    %v934 = vmul.f32 %v916, 1.442695
    %v935 = vpow.pop %v934
    %v936 = vmul.f32 %v917, 1.442695
    %v937 = vpow.pop %v936
    %v938 = vmul.f32 %v918, 1.442695
    %v939 = vpow.pop %v938
    %v940 = vmul.f32 %v919, 1.442695
    %v941 = vpow.pop %v940
    %v942 = vmul.f32 %v920, 1.442695
    %v943 = vpow.pop %v942
    %v944 = vmul.f32 %v921, 1.442695
    %v945 = vpow.pop %v944
    %v946 = vmul.f32 %v922, 1.442695
    %v947 = vpow.pop %v946
    %v948 = vmul.f32 %v923, 1.442695
    %v949 = vpow.pop %v948
    %v950 = vmul.f32 %v924, 1.442695
    %v951 = vpow.pop %v950
    %v952 = vmul.f32 %v925, 1.442695
    %v953 = vpow.pop %v952
    %v954 = vmul.f32 %v926, 1.442695
    %v955 = vpow.pop %v954
    %v956 = vmul.f32 %v927, 1.442695
    %v957 = vpow.pop %v956
    %v958 = vmul.f32 %v928, 1.442695
    %v959 = vpow.pop %v958
    %v960 = vmul.f32 %v929, 1.442695
    %v961 = vpow.pop %v960
    %v962 = vmul.f32 %v930, 1.442695
    %v963 = vpow.pop %v962
    %v964 = vmul.f32 %v931, 1.442695
    %v965 = vpow.pop %v964
    %v966 = vmul.f32 %v932, 1.442695
    %v967 = vpow.pop %v966
    %v968 = vmul.f32 %v933, 1.442695
    %v969 = vpow.pop %v968
    %v970 = vadd.f32 %v935, %v937
    %v971 = vadd.f32 %v970, %v939
    %v972 = vadd.f32 %v971, %v941
    %v973 = vadd.f32 %v972, %v943
    %v974 = vadd.f32 %v973, %v945
    %v975 = vadd.f32 %v974, %v947
    %v976 = vadd.f32 %v975, %v949
    %v977 = vadd.f32 %v976, %v951
    %v978 = vadd.f32 %v977, %v953
    %v979 = vadd.f32 %v978, %v955
    %v980 = vadd.f32 %v979, %v957
    %v981 = vadd.f32 %v980, %v959
    %v982 = vadd.f32 %v981, %v961
    %v983 = vadd.f32 %v982, %v963
    %v984 = vadd.f32 %v983, %v965
    %v985 = vadd.f32 %v984, %v967
    %v986 = vrot.slane %v985, 4
    %v987 = vadd.f32 %v985, %v986
    %v988 = vrot.slane %v987, 2
    %v989 = vadd.f32 %v987, %v988
    %v990 = vrot.slane %v989, 1
    %v991 = vadd.f32 %v989, %v990
    %v992 = vadd.f32 %v969, %v937
    %v993 = vadd.f32 %v992, %v939
    %v994 = vadd.f32 %v993, %v941
    %v995 = vadd.f32 %v994, %v943
    %v996 = vadd.f32 %v995, %v945
    %v997 = vadd.f32 %v996, %v947
    %v998 = vadd.f32 %v997, %v949
    %v999 = vadd.f32 %v998, %v951
    %v1000 = vadd.f32 %v999, %v953
    %v1001 = vadd.f32 %v1000, %v955
    %v1002 = vadd.f32 %v1001, %v957
    %v1003 = vadd.f32 %v1002, %v959
    %v1004 = vadd.f32 %v1003, %v961
    %v1005 = vadd.f32 %v1004, %v963
    %v1006 = vadd.f32 %v1005, %v965
    %v1007 = vadd.f32 %v1006, %v967
    %v1008 = vrot.slane %v1007, 4
    %v1009 = vadd.f32 %v1007, %v1008
    %v1010 = vrot.slane %v1009, 2
    %v1011 = vadd.f32 %v1009, %v1010
    %v1012 = vrot.slane %v1011, 1
    %v1013 = vadd.f32 %v1011, %v1012
    %v1014 = vrcp.pop %v991
    %v1015 = vmul.f32 0.0078125, %v1014
    %v1016 = vrcp.pop %v1013
    %v1017 = vmul.f32 0.0078125, %v1016
    %v1018 = vmul.f32 %v935, %v1015
    %v1019 = vmul.f32 %v937, %v1015
    %v1020 = vmul.f32 %v939, %v1015
    %v1021 = vmul.f32 %v941, %v1015
    %v1022 = vmul.f32 %v943, %v1015
    %v1023 = vmul.f32 %v945, %v1015
    %v1024 = vmul.f32 %v947, %v1015
    %v1025 = vmul.f32 %v949, %v1015
    %v1026 = vmul.f32 %v951, %v1015
    %v1027 = vmul.f32 %v953, %v1015
    %v1028 = vmul.f32 %v955, %v1015
    %v1029 = vmul.f32 %v957, %v1015
    %v1030 = vmul.f32 %v959, %v1015
    %v1031 = vmul.f32 %v961, %v1015
    %v1032 = vmul.f32 %v963, %v1015
    %v1033 = vmul.f32 %v965, %v1015
    %v1034 = vmul.f32 %v967, %v1015
    %v1035 = vmul.f32 %v969, %v1017
    %v1036 = vmul.f32 %v937, %v1017
    %v1037 = vmul.f32 %v939, %v1017
    %v1038 = vmul.f32 %v941, %v1017
    %v1039 = vmul.f32 %v943, %v1017
    %v1040 = vmul.f32 %v945, %v1017
    %v1041 = vmul.f32 %v947, %v1017
    %v1042 = vmul.f32 %v949, %v1017
    %v1043 = vmul.f32 %v951, %v1017
    %v1044 = vmul.f32 %v953, %v1017
    %v1045 = vmul.f32 %v955, %v1017
    %v1046 = vmul.f32 %v957, %v1017
    %v1047 = vmul.f32 %v959, %v1017
    %v1048 = vmul.f32 %v961, %v1017
    %v1049 = vmul.f32 %v963, %v1017
    %v1050 = vmul.f32 %v965, %v1017
    %v1051 = vmul.f32 %v967, %v1017
    %1052 = vadd.xlane.f32.xlu0 %v1018
    %v1053 = vpop.xlane.xlu0 %1052
    %1054 = vadd.xlane.f32.xlu0 %v1019
    %v1055 = vpop.xlane.xlu0 %1054
    %1056 = vadd.xlane.f32.xlu0 %v1020
    %v1057 = vpop.xlane.xlu0 %1056
    %1058 = vadd.xlane.f32.xlu0 %v1021
    %v1059 = vpop.xlane.xlu0 %1058
    %1060 = vadd.xlane.f32.xlu0 %v1022
    %v1061 = vpop.xlane.xlu0 %1060
    %1062 = vadd.xlane.f32.xlu0 %v1023
    %v1063 = vpop.xlane.xlu0 %1062
    %1064 = vadd.xlane.f32.xlu0 %v1024
    %v1065 = vpop.xlane.xlu0 %1064
    %1066 = vadd.xlane.f32.xlu0 %v1025
    %v1067 = vpop.xlane.xlu0 %1066
    %1068 = vadd.xlane.f32.xlu0 %v1026
    %v1069 = vpop.xlane.xlu0 %1068
    %1070 = vadd.xlane.f32.xlu0 %v1027
    %v1071 = vpop.xlane.xlu0 %1070
    %1072 = vadd.xlane.f32.xlu0 %v1028
    %v1073 = vpop.xlane.xlu0 %1072
    %1074 = vadd.xlane.f32.xlu0 %v1029
    %v1075 = vpop.xlane.xlu0 %1074
    %1076 = vadd.xlane.f32.xlu0 %v1030
    %v1077 = vpop.xlane.xlu0 %1076
    %1078 = vadd.xlane.f32.xlu0 %v1031
    %v1079 = vpop.xlane.xlu0 %1078
    %1080 = vadd.xlane.f32.xlu0 %v1032
    %v1081 = vpop.xlane.xlu0 %1080
    %1082 = vadd.xlane.f32.xlu0 %v1033
    %v1083 = vpop.xlane.xlu0 %1082
    %1084 = vadd.xlane.f32.xlu0 %v1034
    %v1085 = vpop.xlane.xlu0 %1084
    %1086 = vadd.xlane.f32.xlu0 %v1035
    %v1087 = vpop.xlane.xlu0 %1086
    %1088 = vadd.xlane.f32.xlu0 %v1036
    %v1089 = vpop.xlane.xlu0 %1088
    %1090 = vadd.xlane.f32.xlu0 %v1037
    %v1091 = vpop.xlane.xlu0 %1090
    %1092 = vadd.xlane.f32.xlu0 %v1038
    %v1093 = vpop.xlane.xlu0 %1092
    %1094 = vadd.xlane.f32.xlu0 %v1039
    %v1095 = vpop.xlane.xlu0 %1094
    %1096 = vadd.xlane.f32.xlu0 %v1040
    %v1097 = vpop.xlane.xlu0 %1096
    %1098 = vadd.xlane.f32.xlu0 %v1041
    %v1099 = vpop.xlane.xlu0 %1098
    %1100 = vadd.xlane.f32.xlu0 %v1042
    %v1101 = vpop.xlane.xlu0 %1100
    %1102 = vadd.xlane.f32.xlu0 %v1043
    %v1103 = vpop.xlane.xlu0 %1102
    %1104 = vadd.xlane.f32.xlu0 %v1044
    %v1105 = vpop.xlane.xlu0 %1104
    %1106 = vadd.xlane.f32.xlu0 %v1045
    %v1107 = vpop.xlane.xlu0 %1106
    %1108 = vadd.xlane.f32.xlu0 %v1046
    %v1109 = vpop.xlane.xlu0 %1108
    %1110 = vadd.xlane.f32.xlu0 %v1047
    %v1111 = vpop.xlane.xlu0 %1110
    %1112 = vadd.xlane.f32.xlu0 %v1048
    %v1113 = vpop.xlane.xlu0 %1112
    %1114 = vadd.xlane.f32.xlu0 %v1049
    %v1115 = vpop.xlane.xlu0 %1114
    %1116 = vadd.xlane.f32.xlu0 %v1050
    %v1117 = vpop.xlane.xlu0 %1116
    %1118 = vadd.xlane.f32.xlu0 %v1051
    %v1119 = vpop.xlane.xlu0 %1118
    %v1120 = vrcp.pop %v1053
    %v1121 = vmul.f32 0.007352941, %v1120
    %v1122 = vrcp.pop %v1055
    %v1123 = vmul.f32 0.007352941, %v1122
    %v1124 = vrcp.pop %v1057
    %v1125 = vmul.f32 0.007352941, %v1124
    %v1126 = vrcp.pop %v1059
    %v1127 = vmul.f32 0.007352941, %v1126
    %v1128 = vrcp.pop %v1061
    %v1129 = vmul.f32 0.007352941, %v1128
    %v1130 = vrcp.pop %v1063
    %v1131 = vmul.f32 0.007352941, %v1130
    %v1132 = vrcp.pop %v1065
    %v1133 = vmul.f32 0.007352941, %v1132
    %v1134 = vrcp.pop %v1067
    %v1135 = vmul.f32 0.007352941, %v1134
    %v1136 = vrcp.pop %v1069
    %v1137 = vmul.f32 0.007352941, %v1136
    %v1138 = vrcp.pop %v1071
    %v1139 = vmul.f32 0.007352941, %v1138
    %v1140 = vrcp.pop %v1073
    %v1141 = vmul.f32 0.007352941, %v1140
    %v1142 = vrcp.pop %v1075
    %v1143 = vmul.f32 0.007352941, %v1142
    %v1144 = vrcp.pop %v1077
    %v1145 = vmul.f32 0.007352941, %v1144
    %v1146 = vrcp.pop %v1079
    %v1147 = vmul.f32 0.007352941, %v1146
    %v1148 = vrcp.pop %v1081
    %v1149 = vmul.f32 0.007352941, %v1148
    %v1150 = vrcp.pop %v1083
    %v1151 = vmul.f32 0.007352941, %v1150
    %v1152 = vrcp.pop %v1085
    %v1153 = vmul.f32 0.007352941, %v1152
    %v1154 = vrcp.pop %v1087
    %v1155 = vmul.f32 0.007352941, %v1154
    %v1156 = vrcp.pop %v1089
    %v1157 = vmul.f32 0.007352941, %v1156
    %v1158 = vrcp.pop %v1091
    %v1159 = vmul.f32 0.007352941, %v1158
    %v1160 = vrcp.pop %v1093
    %v1161 = vmul.f32 0.007352941, %v1160
    %v1162 = vrcp.pop %v1095
    %v1163 = vmul.f32 0.007352941, %v1162
    %v1164 = vrcp.pop %v1097
    %v1165 = vmul.f32 0.007352941, %v1164
    %v1166 = vrcp.pop %v1099
    %v1167 = vmul.f32 0.007352941, %v1166
    %v1168 = vrcp.pop %v1101
    %v1169 = vmul.f32 0.007352941, %v1168
    %v1170 = vrcp.pop %v1103
    %v1171 = vmul.f32 0.007352941, %v1170
    %v1172 = vrcp.pop %v1105
    %v1173 = vmul.f32 0.007352941, %v1172
    %v1174 = vrcp.pop %v1107
    %v1175 = vmul.f32 0.007352941, %v1174
    %v1176 = vrcp.pop %v1109
    %v1177 = vmul.f32 0.007352941, %v1176
    %v1178 = vrcp.pop %v1111
    %v1179 = vmul.f32 0.007352941, %v1178
    %v1180 = vrcp.pop %v1113
    %v1181 = vmul.f32 0.007352941, %v1180
    %v1182 = vrcp.pop %v1115
    %v1183 = vmul.f32 0.007352941, %v1182
    %v1184 = vrcp.pop %v1117
    %v1185 = vmul.f32 0.007352941, %v1184
    %v1186 = vrcp.pop %v1119
    %v1187 = vmul.f32 0.007352941, %v1186
    %v1188 = vmul.f32 %v1018, %v1121
    %v1189 = vmul.f32 %v1019, %v1123
    %v1190 = vmul.f32 %v1020, %v1125
    %v1191 = vmul.f32 %v1021, %v1127
    %v1192 = vmul.f32 %v1022, %v1129
    %v1193 = vmul.f32 %v1023, %v1131
    %v1194 = vmul.f32 %v1024, %v1133
    %v1195 = vmul.f32 %v1025, %v1135
    %v1196 = vmul.f32 %v1026, %v1137
    %v1197 = vmul.f32 %v1027, %v1139
    %v1198 = vmul.f32 %v1028, %v1141
    %v1199 = vmul.f32 %v1029, %v1143
    %v1200 = vmul.f32 %v1030, %v1145
    %v1201 = vmul.f32 %v1031, %v1147
    %v1202 = vmul.f32 %v1032, %v1149
    %v1203 = vmul.f32 %v1033, %v1151
    %v1204 = vmul.f32 %v1034, %v1153
    %v1205 = vmul.f32 %v1035, %v1155
    %v1206 = vmul.f32 %v1036, %v1157
    %v1207 = vmul.f32 %v1037, %v1159
    %v1208 = vmul.f32 %v1038, %v1161
    %v1209 = vmul.f32 %v1039, %v1163
    %v1210 = vmul.f32 %v1040, %v1165
    %v1211 = vmul.f32 %v1041, %v1167
    %v1212 = vmul.f32 %v1042, %v1169
    %v1213 = vmul.f32 %v1043, %v1171
    %v1214 = vmul.f32 %v1044, %v1173
    %v1215 = vmul.f32 %v1045, %v1175
    %v1216 = vmul.f32 %v1046, %v1177
    %v1217 = vmul.f32 %v1047, %v1179
    %v1218 = vmul.f32 %v1048, %v1181
    %v1219 = vmul.f32 %v1049, %v1183
    %v1220 = vmul.f32 %v1050, %v1185
    %v1221 = vmul.f32 %v1051, %v1187
    %v1222 = vadd.f32 %v1188, %v1189
    %v1223 = vadd.f32 %v1222, %v1190
    %v1224 = vadd.f32 %v1223, %v1191
    %v1225 = vadd.f32 %v1224, %v1192
    %v1226 = vadd.f32 %v1225, %v1193
    %v1227 = vadd.f32 %v1226, %v1194
    %v1228 = vadd.f32 %v1227, %v1195
    %v1229 = vadd.f32 %v1228, %v1196
    %v1230 = vadd.f32 %v1229, %v1197
    %v1231 = vadd.f32 %v1230, %v1198
    %v1232 = vadd.f32 %v1231, %v1199
    %v1233 = vadd.f32 %v1232, %v1200
    %v1234 = vadd.f32 %v1233, %v1201
    %v1235 = vadd.f32 %v1234, %v1202
    %v1236 = vadd.f32 %v1235, %v1203
    %v1237 = vadd.f32 %v1236, %v1204
    %v1238 = vrot.slane %v1237, 4
    %v1239 = vadd.f32 %v1237, %v1238
    %v1240 = vrot.slane %v1239, 2
    %v1241 = vadd.f32 %v1239, %v1240
    %v1242 = vrot.slane %v1241, 1
    %v1243 = vadd.f32 %v1241, %v1242
    %v1244 = vadd.f32 %v1205, %v1206
    %v1245 = vadd.f32 %v1244, %v1207
    %v1246 = vadd.f32 %v1245, %v1208
    %v1247 = vadd.f32 %v1246, %v1209
    %v1248 = vadd.f32 %v1247, %v1210
    %v1249 = vadd.f32 %v1248, %v1211
    %v1250 = vadd.f32 %v1249, %v1212
    %v1251 = vadd.f32 %v1250, %v1213
    %v1252 = vadd.f32 %v1251, %v1214
    %v1253 = vadd.f32 %v1252, %v1215
    %v1254 = vadd.f32 %v1253, %v1216
    %v1255 = vadd.f32 %v1254, %v1217
    %v1256 = vadd.f32 %v1255, %v1218
    %v1257 = vadd.f32 %v1256, %v1219
    %v1258 = vadd.f32 %v1257, %v1220
    %v1259 = vadd.f32 %v1258, %v1221
    %v1260 = vrot.slane %v1259, 4
    %v1261 = vadd.f32 %v1259, %v1260
    %v1262 = vrot.slane %v1261, 2
    %v1263 = vadd.f32 %v1261, %v1262
    %v1264 = vrot.slane %v1263, 1
    %v1265 = vadd.f32 %v1263, %v1264
    %v1266 = vrcp.pop %v1243
    %v1267 = vmul.f32 0.0078125, %v1266
    %v1268 = vrcp.pop %v1265
    %v1269 = vmul.f32 0.0078125, %v1268
    %v1270 = vmul.f32 %v1188, %v1267
    %v1271 = vmul.f32 %v1189, %v1267
    %v1272 = vmul.f32 %v1190, %v1267
    %v1273 = vmul.f32 %v1191, %v1267
    %v1274 = vmul.f32 %v1192, %v1267
    %v1275 = vmul.f32 %v1193, %v1267
    %v1276 = vmul.f32 %v1194, %v1267
    %v1277 = vmul.f32 %v1195, %v1267
    %v1278 = vmul.f32 %v1196, %v1267
    %v1279 = vmul.f32 %v1197, %v1267
    %v1280 = vmul.f32 %v1198, %v1267
    %v1281 = vmul.f32 %v1199, %v1267
    %v1282 = vmul.f32 %v1200, %v1267
    %v1283 = vmul.f32 %v1201, %v1267
    %v1284 = vmul.f32 %v1202, %v1267
    %v1285 = vmul.f32 %v1203, %v1267
    %v1286 = vmul.f32 %v1204, %v1267
    %v1287 = vmul.f32 %v1205, %v1269
    %v1288 = vmul.f32 %v1206, %v1269
    %v1289 = vmul.f32 %v1207, %v1269
    %v1290 = vmul.f32 %v1208, %v1269
    %v1291 = vmul.f32 %v1209, %v1269
    %v1292 = vmul.f32 %v1210, %v1269
    %v1293 = vmul.f32 %v1211, %v1269
    %v1294 = vmul.f32 %v1212, %v1269
    %v1295 = vmul.f32 %v1213, %v1269
    %v1296 = vmul.f32 %v1214, %v1269
    %v1297 = vmul.f32 %v1215, %v1269
    %v1298 = vmul.f32 %v1216, %v1269
    %v1299 = vmul.f32 %v1217, %v1269
    %v1300 = vmul.f32 %v1218, %v1269
    %v1301 = vmul.f32 %v1219, %v1269
    %v1302 = vmul.f32 %v1220, %v1269
    %v1303 = vmul.f32 %v1221, %v1269
    %1304 = vadd.xlane.f32.xlu0 %v1270
    %v1305 = vpop.xlane.xlu0 %1304
    %1306 = vadd.xlane.f32.xlu0 %v1271
    %v1307 = vpop.xlane.xlu0 %1306
    %1308 = vadd.xlane.f32.xlu0 %v1272
    %v1309 = vpop.xlane.xlu0 %1308
    %1310 = vadd.xlane.f32.xlu0 %v1273
    %v1311 = vpop.xlane.xlu0 %1310
    %1312 = vadd.xlane.f32.xlu0 %v1274
    %v1313 = vpop.xlane.xlu0 %1312
    %1314 = vadd.xlane.f32.xlu0 %v1275
    %v1315 = vpop.xlane.xlu0 %1314
    %1316 = vadd.xlane.f32.xlu0 %v1276
    %v1317 = vpop.xlane.xlu0 %1316
    %1318 = vadd.xlane.f32.xlu0 %v1277
    %v1319 = vpop.xlane.xlu0 %1318
    %1320 = vadd.xlane.f32.xlu0 %v1278
    %v1321 = vpop.xlane.xlu0 %1320
    %1322 = vadd.xlane.f32.xlu0 %v1279
    %v1323 = vpop.xlane.xlu0 %1322
    %1324 = vadd.xlane.f32.xlu0 %v1280
    %v1325 = vpop.xlane.xlu0 %1324
    %1326 = vadd.xlane.f32.xlu0 %v1281
    %v1327 = vpop.xlane.xlu0 %1326
    %1328 = vadd.xlane.f32.xlu0 %v1282
    %v1329 = vpop.xlane.xlu0 %1328
    %1330 = vadd.xlane.f32.xlu0 %v1283
    %v1331 = vpop.xlane.xlu0 %1330
    %1332 = vadd.xlane.f32.xlu0 %v1284
    %v1333 = vpop.xlane.xlu0 %1332
    %1334 = vadd.xlane.f32.xlu0 %v1285
    %v1335 = vpop.xlane.xlu0 %1334
    %1336 = vadd.xlane.f32.xlu0 %v1286
    %v1337 = vpop.xlane.xlu0 %1336
    %1338 = vadd.xlane.f32.xlu0 %v1287
    %v1339 = vpop.xlane.xlu0 %1338
    %1340 = vadd.xlane.f32.xlu0 %v1288
    %v1341 = vpop.xlane.xlu0 %1340
    %1342 = vadd.xlane.f32.xlu0 %v1289
    %v1343 = vpop.xlane.xlu0 %1342
    %1344 = vadd.xlane.f32.xlu0 %v1290
    %v1345 = vpop.xlane.xlu0 %1344
    %1346 = vadd.xlane.f32.xlu0 %v1291
    %v1347 = vpop.xlane.xlu0 %1346
    %1348 = vadd.xlane.f32.xlu0 %v1292
    %v1349 = vpop.xlane.xlu0 %1348
    %1350 = vadd.xlane.f32.xlu0 %v1293
    %v1351 = vpop.xlane.xlu0 %1350
    %1352 = vadd.xlane.f32.xlu0 %v1294
    %v1353 = vpop.xlane.xlu0 %1352
    %1354 = vadd.xlane.f32.xlu0 %v1295
    %v1355 = vpop.xlane.xlu0 %1354
    %1356 = vadd.xlane.f32.xlu0 %v1296
    %v1357 = vpop.xlane.xlu0 %1356
    %1358 = vadd.xlane.f32.xlu0 %v1297
    %v1359 = vpop.xlane.xlu0 %1358
    %1360 = vadd.xlane.f32.xlu0 %v1298
    %v1361 = vpop.xlane.xlu0 %1360
    %1362 = vadd.xlane.f32.xlu0 %v1299
    %v1363 = vpop.xlane.xlu0 %1362
    %1364 = vadd.xlane.f32.xlu0 %v1300
    %v1365 = vpop.xlane.xlu0 %1364
    %1366 = vadd.xlane.f32.xlu0 %v1301
    %v1367 = vpop.xlane.xlu0 %1366
    %1368 = vadd.xlane.f32.xlu0 %v1302
    %v1369 = vpop.xlane.xlu0 %1368
    %1370 = vadd.xlane.f32.xlu0 %v1303
    %v1371 = vpop.xlane.xlu0 %1370
    %v1372 = vrcp.pop %v1305
    %v1373 = vmul.f32 0.007352941, %v1372
    %v1374 = vrcp.pop %v1307
    %v1375 = vmul.f32 0.007352941, %v1374
    %v1376 = vrcp.pop %v1309
    %v1377 = vmul.f32 0.007352941, %v1376
    %v1378 = vrcp.pop %v1311
    %v1379 = vmul.f32 0.007352941, %v1378
    %v1380 = vrcp.pop %v1313
    %v1381 = vmul.f32 0.007352941, %v1380
    %v1382 = vrcp.pop %v1315
    %v1383 = vmul.f32 0.007352941, %v1382
    %v1384 = vrcp.pop %v1317
    %v1385 = vmul.f32 0.007352941, %v1384
    %v1386 = vrcp.pop %v1319
    %v1387 = vmul.f32 0.007352941, %v1386
    %v1388 = vrcp.pop %v1321
    %v1389 = vmul.f32 0.007352941, %v1388
    %v1390 = vrcp.pop %v1323
    %v1391 = vmul.f32 0.007352941, %v1390
    %v1392 = vrcp.pop %v1325
    %v1393 = vmul.f32 0.007352941, %v1392
    %v1394 = vrcp.pop %v1327
    %v1395 = vmul.f32 0.007352941, %v1394
    %v1396 = vrcp.pop %v1329
    %v1397 = vmul.f32 0.007352941, %v1396
    %v1398 = vrcp.pop %v1331
    %v1399 = vmul.f32 0.007352941, %v1398
    %v1400 = vrcp.pop %v1333
    %v1401 = vmul.f32 0.007352941, %v1400
    %v1402 = vrcp.pop %v1335
    %v1403 = vmul.f32 0.007352941, %v1402
    %v1404 = vrcp.pop %v1337
    %v1405 = vmul.f32 0.007352941, %v1404
    %v1406 = vrcp.pop %v1339
    %v1407 = vmul.f32 0.007352941, %v1406
    %v1408 = vrcp.pop %v1341
    %v1409 = vmul.f32 0.007352941, %v1408
    %v1410 = vrcp.pop %v1343
    %v1411 = vmul.f32 0.007352941, %v1410
    %v1412 = vrcp.pop %v1345
    %v1413 = vmul.f32 0.007352941, %v1412
    %v1414 = vrcp.pop %v1347
    %v1415 = vmul.f32 0.007352941, %v1414
    %v1416 = vrcp.pop %v1349
    %v1417 = vmul.f32 0.007352941, %v1416
    %v1418 = vrcp.pop %v1351
    %v1419 = vmul.f32 0.007352941, %v1418
    %v1420 = vrcp.pop %v1353
    %v1421 = vmul.f32 0.007352941, %v1420
    %v1422 = vrcp.pop %v1355
    %v1423 = vmul.f32 0.007352941, %v1422
    %v1424 = vrcp.pop %v1357
    %v1425 = vmul.f32 0.007352941, %v1424
    %v1426 = vrcp.pop %v1359
    %v1427 = vmul.f32 0.007352941, %v1426
    %v1428 = vrcp.pop %v1361
    %v1429 = vmul.f32 0.007352941, %v1428
    %v1430 = vrcp.pop %v1363
    %v1431 = vmul.f32 0.007352941, %v1430
    %v1432 = vrcp.pop %v1365
    %v1433 = vmul.f32 0.007352941, %v1432
    %v1434 = vrcp.pop %v1367
    %v1435 = vmul.f32 0.007352941, %v1434
    %v1436 = vrcp.pop %v1369
    %v1437 = vmul.f32 0.007352941, %v1436
    %v1438 = vrcp.pop %v1371
    %v1439 = vmul.f32 0.007352941, %v1438
    %v1440 = vmul.f32 %v1270, %v1373
    %v1441 = vmul.f32 %v1271, %v1375
    %v1442 = vmul.f32 %v1272, %v1377
    %v1443 = vmul.f32 %v1273, %v1379
    %v1444 = vmul.f32 %v1274, %v1381
    %v1445 = vmul.f32 %v1275, %v1383
    %v1446 = vmul.f32 %v1276, %v1385
    %v1447 = vmul.f32 %v1277, %v1387
    %v1448 = vmul.f32 %v1278, %v1389
    %v1449 = vmul.f32 %v1279, %v1391
    %v1450 = vmul.f32 %v1280, %v1393
    %v1451 = vmul.f32 %v1281, %v1395
    %v1452 = vmul.f32 %v1282, %v1397
    %v1453 = vmul.f32 %v1283, %v1399
    %v1454 = vmul.f32 %v1284, %v1401
    %v1455 = vmul.f32 %v1285, %v1403
    %v1456 = vmul.f32 %v1286, %v1405
    %v1457 = vmul.f32 %v1287, %v1407
    %v1458 = vmul.f32 %v1288, %v1409
    %v1459 = vmul.f32 %v1289, %v1411
    %v1460 = vmul.f32 %v1290, %v1413
    %v1461 = vmul.f32 %v1291, %v1415
    %v1462 = vmul.f32 %v1292, %v1417
    %v1463 = vmul.f32 %v1293, %v1419
    %v1464 = vmul.f32 %v1294, %v1421
    %v1465 = vmul.f32 %v1295, %v1423
    %v1466 = vmul.f32 %v1296, %v1425
    %v1467 = vmul.f32 %v1297, %v1427
    %v1468 = vmul.f32 %v1298, %v1429
    %v1469 = vmul.f32 %v1299, %v1431
    %v1470 = vmul.f32 %v1300, %v1433
    %v1471 = vmul.f32 %v1301, %v1435
    %v1472 = vmul.f32 %v1302, %v1437
    %v1473 = vmul.f32 %v1303, %v1439
    %v1474 = vadd.f32 %v1440, %v1441
    %v1475 = vadd.f32 %v1474, %v1442
    %v1476 = vadd.f32 %v1475, %v1443
    %v1477 = vadd.f32 %v1476, %v1444
    %v1478 = vadd.f32 %v1477, %v1445
    %v1479 = vadd.f32 %v1478, %v1446
    %v1480 = vadd.f32 %v1479, %v1447
    %v1481 = vadd.f32 %v1480, %v1448
    %v1482 = vadd.f32 %v1481, %v1449
    %v1483 = vadd.f32 %v1482, %v1450
    %v1484 = vadd.f32 %v1483, %v1451
    %v1485 = vadd.f32 %v1484, %v1452
    %v1486 = vadd.f32 %v1485, %v1453
    %v1487 = vadd.f32 %v1486, %v1454
    %v1488 = vadd.f32 %v1487, %v1455
    %v1489 = vadd.f32 %v1488, %v1456
    %v1490 = vrot.slane %v1489, 4
    %v1491 = vadd.f32 %v1489, %v1490
    %v1492 = vrot.slane %v1491, 2
    %v1493 = vadd.f32 %v1491, %v1492
    %v1494 = vrot.slane %v1493, 1
    %v1495 = vadd.f32 %v1493, %v1494
    %v1496 = vadd.f32 %v1457, %v1458
    %v1497 = vadd.f32 %v1496, %v1459
    %v1498 = vadd.f32 %v1497, %v1460
    %v1499 = vadd.f32 %v1498, %v1461
    %v1500 = vadd.f32 %v1499, %v1462
    %v1501 = vadd.f32 %v1500, %v1463
    %v1502 = vadd.f32 %v1501, %v1464
    %v1503 = vadd.f32 %v1502, %v1465
    %v1504 = vadd.f32 %v1503, %v1466
    %v1505 = vadd.f32 %v1504, %v1467
    %v1506 = vadd.f32 %v1505, %v1468
    %v1507 = vadd.f32 %v1506, %v1469
    %v1508 = vadd.f32 %v1507, %v1470
    %v1509 = vadd.f32 %v1508, %v1471
    %v1510 = vadd.f32 %v1509, %v1472
    %v1511 = vadd.f32 %v1510, %v1473
    %v1512 = vrot.slane %v1511, 4
    %v1513 = vadd.f32 %v1511, %v1512
    %v1514 = vrot.slane %v1513, 2
    %v1515 = vadd.f32 %v1513, %v1514
    %v1516 = vrot.slane %v1515, 1
    %v1517 = vadd.f32 %v1515, %v1516
    %v1518 = vrcp.pop %v1495
    %v1519 = vmul.f32 0.0078125, %v1518
    %v1520 = vrcp.pop %v1517
    %v1521 = vmul.f32 0.0078125, %v1520
    %v1522 = vmul.f32 %v1440, %v1519
    %v1523 = vmul.f32 %v1457, %v1521
    %1524 = vadd.xlane.f32.xlu0 %v1522
    %v1525 = vpop.xlane.xlu0 %1524
    %1526 = vadd.xlane.f32.xlu0 %v1523
    %v1527 = vpop.xlane.xlu0 %1526
    %v1528 = vrcp.pop %v1525
    %v1529 = vmul.f32 0.007352941, %v1528
    %v1530 = vrcp.pop %v1527
    %v1531 = vmul.f32 0.007352941, %v1530
    %v1532 = vmul.f32 %v1522, %v1529
    %v1533 = vmul.f32 %v1523, %v1531
    %1534 = vadd.xlane.f32.xlu0 %v1532
    %v1535 = vpop.xlane.xlu0 %1534
    %1536 = vadd.xlane.f32.xlu0 %v1533
    %v1537 = vpop.xlane.xlu0 %1536
    %v1538 = vrcp.pop %v1535
    %v1539 = vmul.f32 1.0, %v1538
    %v1540 = vrcp.pop %v1537
    %v1541 = vmul.f32 1.0, %v1540
    %v1542 = vmul.f32 %v1532, %v1539
    %v1543 = vmul.f32 %v1533, %v1541
    %1544 = vmax.xlane.f32.xlu0 %v1542
    %v1545 = vpop.xlane.xlu0 %1544
    %1546 = vmax.xlane.f32.xlu0 %v1543
    %v1547 = vpop.xlane.xlu0 %1546
    %v1548 = vsub.f32 %v1542, %v1545
    %v1549 = vsub.f32 %v1543, %v1547
    %v1550 = vmul.f32 %v1548, 1.442695
    %v1551 = vpow.pop %v1550
    %v1552 = vmul.f32 %v1549, 1.442695
    %v1553 = vpow.pop %v1552
    %1554 = vadd.xlane.f32.xlu0 %v1551
    %v1555 = vpop.xlane.xlu0 %1554
    %1556 = vadd.xlane.f32.xlu0 %v1553
    %v1557 = vpop.xlane.xlu0 %1556
    %v1558 = vrcp.pop %v1555
    %v1559 = vrcp.pop %v1557
    %v1560 = vmul.f32 %v1551, %v1558
    %v1561 = vmul.f32 %v1553, %v1559
    %1562 = vmax.xlane.f32.xlu0 %v763
    %v1563 = vpop.xlane.xlu0 %1562
    %1564 = vmax.xlane.f32.xlu0 %v768
    %v1565 = vpop.xlane.xlu0 %1564
    %v1566 = vsub.f32 %v763, %v1563
    %v1567 = vsub.f32 %v768, %v1565
    %v1568 = vmul.f32 %v1566, 1.442695
    %v1569 = vpow.pop %v1568
    %v1570 = vmul.f32 %v1567, 1.442695
    %v1571 = vpow.pop %v1570
    %1572 = vadd.xlane.f32.xlu0 %v1569
    %v1573 = vpop.xlane.xlu0 %1572
    %1574 = vadd.xlane.f32.xlu0 %v1571
    %v1575 = vpop.xlane.xlu0 %1574
    %v1576 = vlog2.pop %v1573
    %v1577 = vmul.f32 %v1576, 0.6931472
    %v1578 = vlog2.pop %v1575
    %v1579 = vmul.f32 %v1578, 0.6931472
    %v1580 = vsub.f32 %v1566, %v1577
    %v1581 = vsub.f32 %v1567, %v1579
    %v1582 = vmul.f32 %v1561, %v1580
    %v1583 = vmul.f32 %v1560, %v1581
    %v1584 = vadd.f32 %v1582, %v1583
    %v1585 = vsub.f32 0.0, %v1584
    %1586 = vadd.xlane.f32.xlu0 %v1585
    %v1587 = vpop.xlane.xlu0 %1586
    %v1588 = vrot.slane %v1587, 4
    %v1589 = vadd.f32 %v1587, %v1588
    %v1590 = vrot.slane %v1589, 2
    %v1591 = vadd.f32 %v1589, %v1590
    %v1592 = vrot.slane %v1591, 1
    %v1593 = vadd.f32 %v1591, %v1592
    %v1594 = vmul.f32 %v1593, 0.125
    %vm1595 = vcmask 0
    %1596 = vst.msk [vmem:[#allocation9] sm:$0x1] %vm1595, %v1594
    %s1597 = smul.u32 8, 1
    %s1598 = sshll.u32 %s1597, 4
    %1599 = dma.done %s572, %s1598
    // Predicated region
    $region38: #{tpu_custom_call.1} parent=1 // pred_check
      _
    $region39: #{tpu_custom_call.1} parent=1 // pred_check_branch
      %1601 = sbr.rel (0) target = $region41
    $region40: #{tpu_custom_call.1} parent=1 // pred_region
      %s1603 = ssub.s32 16, 16
      %1604 = vsyncadd [#allocation8], %s1603
      %s1606 = sshll.u32 [#allocation9], 4
      %s1607 = int_to_ptr.vmem [resolvable:$true] %s1606
      %1609 = dma.vmem_to_hbm [thread:$0]  %s1607, 16, %s7, [#allocation8]
    $region41: #{tpu_custom_call.1} parent=1 // pred_fallthru
      _
    // Predicated region
    $region42: #{tpu_custom_call.1} parent=1 // pred_check
      _
    $region43: #{tpu_custom_call.1} parent=1 // pred_check_branch
      %1611 = sbr.rel (0) target = $region45
    $region44: #{tpu_custom_call.1} parent=1 // pred_region
      %1612 = dma.done [#allocation8], 16
    $region45: #{tpu_custom_call.1} parent=1 // pred_fallthru
      _
    %1613 = vsyncpa [#allocation7], 1
    %1614 = vsyncpa [#allocation8], 1
  %1615 = vsyncmov [#allocation4]
  %s1616 = vpop.sfrf %1615
  %p1617 = scmp.eq.s32.totalorder %s1616, 0
  %p1618 = pneg %p1617
  %1620 = shalt.err (%p1618)
  %s1621 = scalar_lea.sflag [#allocation4], 1
  %1622 = vsyncmov %s1621
  %s1623 = vpop.sfrf %1622
  %p1624 = scmp.eq.s32.totalorder %s1623, 0
  %p1625 = pneg %p1624
  %1627 = shalt.err (%p1625)

</llo_original>
